<compile_context>
chip_gen: v6e
topology: v6e:2x2x1
jax: 0.10.0
libtpu: 0.0.40
codegen_flags: <defaults>
</compile_context>

<pallas_src>
import math

import jax
import jax.numpy as jnp
from jax.experimental import pallas as pl
from jax.experimental.pallas import tpu as pltpu


def _round_up(x, m):
    return ((x + m - 1) // m) * m


def _output_attention_kernel(x_ref, wcat_ref, maskt_ref, wo_ref, bo_ref, o_ref):
    """One grid step == one block of TB batch columns, all S sequence rows."""
    S, TB, emsize = x_ref.shape
    nhead, E = maskt_ref.shape                    # E is the lane-padded embed_dim

    # Flatten (S, TB) so the projection is one MXU matmul with M = S*TB rows
    # (TB is a multiple of 8, so this is a pure layout relabel).
    xf = x_ref[...].reshape(S * TB, emsize)

    # Fused V-projection + attention-scores projection (single MXU pass):
    # wcat = [Wv^T (lane-padded) | Wk_eff]; the nhead score columns ride in the
    # same weight push / result drain as the E-wide V columns.
    vs = jnp.dot(xf, wcat_ref[...], preferred_element_type=jnp.float32)   # (S*TB, E+nhead)
    v = vs[:, :E]                                                          # (S*TB, E)
    scores = vs[:, E:].reshape(S, TB, nhead)                               # (S, TB, nhead)

    # Softmax over the sequence axis (leading, untiled dim -> cheap VPU reduction).
    m = jnp.max(scores, axis=0, keepdims=True)                             # (1, TB, nhead)
    p = jnp.exp(scores - m)                                                # (S, TB, nhead)
    denom = jnp.sum(p, axis=0)                                             # (TB, nhead)

    # Expand per-head (unnormalized) probs to the embed width with a tiny K=nhead
    # MXU matmul against the 0/1 head-membership mask, then reduce weighted V over
    # S (leading-axis reduction -> plain VPU adds, no XLU).
    maskt = maskt_ref[...]
    p_full = jnp.dot(p.reshape(S * TB, nhead), maskt,
                     preferred_element_type=jnp.float32)                   # (S*TB, E)
    attn = jnp.sum((v * p_full).reshape(S, TB, E), axis=0)                 # (TB, E)

    # Normalize once AFTER the S-reduction: one exact (TB, E) divide instead of
    # S*TB*nhead multiplies on lane-sparse p vregs (no approx-reciprocal error).
    denom_full = jnp.dot(denom, maskt, preferred_element_type=jnp.float32)  # (TB, E)
    attn = attn / denom_full

    # Output projection (bv already folded into bo_eff in the wrapper).
    out = jnp.dot(attn.astype(wo_ref.dtype), wo_ref[...],
                  preferred_element_type=jnp.float32) + bo_ref[...]
    o_ref[...] = out.astype(o_ref.dtype)


def _vmem_budget_bytes():
    """~75% of this generation's physical VMEM: 48 MiB on v7x, 96 MiB on v5e/v6e."""
    try:
        cap = int(pltpu.get_tpu_info().vmem_capacity_bytes)
    except Exception:
        cap = 64 * 1024 * 1024          # conservative fallback: smallest (v7x) VMEM
    return max(16 * 1024 * 1024, (cap * 3) // 4)


def _pick_block_b(B, S, emsize, E_pad, nhead, x_bytes, w_bytes, budget):
    """Largest multiple-of-8 batch block whose *real* working set fits the budget."""
    lanes_x = _round_up(emsize, 128)               # x-tile lane padding
    lanes_vs = _round_up(E_pad + nhead, 128)       # fused-projection result lanes
    # Per-batch-row bytes of the per-step buffers / big f32 intermediates.
    per_row = (2 * S * lanes_x * x_bytes           # x tile (double-buffered DMA)
               + S * lanes_vs * 4                  # fused V+scores result (f32)
               + S * 128 * 4                       # softmax probs (nhead lanes pad to 128)
               + 2 * S * E_pad * 4                 # p_full + weighted-V product (f32)
               + 2 * E_pad * 4)                    # output tile (double-buffered)
    # Grid-invariant weights (single-buffered; the 25% headroom in the budget also
    # covers a fallback to default double-buffering and Mosaic's own scratch).
    weights = (_round_up(emsize, 8) * lanes_vs * w_bytes   # wcat
               + _round_up(nhead, 8) * E_pad * 4           # head mask (f32)
               + E_pad * E_pad * w_bytes                    # Wo^T
               + 8 * E_pad * 4)                             # bo_eff
    avail = budget - weights
    blk = max(8, (avail // per_row) // 8 * 8) if avail > per_row * 8 else 8
    # Keep at least two grid steps so both TensorCores get work on v7x megacore
    # (dimension_semantics=("parallel",) shards the batch-block axis).
    if B > 8:
        blk = min(blk, _round_up((B + 1) // 2, 8))
    return int(max(8, min(blk, _round_up(B, 8), 1024)))


def summary_layer_output_attention(x_sbe, params, nhead, block_b=None,
                                   compute_dtype=jnp.bfloat16):
    """x_sbe: (S, B, emsize) float32 (PyTorch MHA layout). Returns (B, embed_dim) f32."""
    S, B, emsize = x_sbe.shape
    E = params["q_proj_weight"].shape[0]
    hd = E // nhead
    E_pad = _round_up(E, 128)

    # ---- fold all batch-independent math into small effective weights (f32) ----
    bq = params["in_proj_bias"][:E]
    bv = params["in_proj_bias"][2 * E:]
    # Projected + 1/sqrt(head_dim)-scaled query (shared across the whole batch).
    q_scaled = (params["query"][0, 0] @ params["q_proj_weight"].T + bq) / math.sqrt(hd)   # (E,)
    # Head membership: mask[f, h] = 1 iff embed feature f belongs to head h.
    mask = (jnp.arange(E)[:, None] // hd ==
            jnp.arange(nhead)[None, :]).astype(jnp.float32)                 # (E, nhead)
    # scores = x @ wk_eff reproduces the per-head q.k dot products exactly;
    # the +bk term is a per-head constant that cancels under softmax.
    wk_eff = (params["k_proj_weight"].T * q_scaled[None, :]) @ mask          # (emsize, nhead)
    wv = params["v_proj_weight"].T                                           # (emsize, E)
    wo = params["out_proj_weight"].T                                         # (E, E)
    # Softmax probs sum to 1, so bv's contribution to attn is exactly bv.
    bo_eff = params["out_proj_bias"] + bv @ wo                               # (E,)

    # ---- lane-pad embed_dim to a multiple of 128 (dense vregs / unmasked vst) ----
    if E_pad != E:
        wv = jnp.pad(wv, ((0, 0), (0, E_pad - E)))
        wo = jnp.pad(wo, ((0, E_pad - E), (0, E_pad - E)))
        bo_eff = jnp.pad(bo_eff, (0, E_pad - E))
    # Head-of-lane map; padded lanes are assigned to head 0 so the softmax
    # denominator stays nonzero there (their V contribution is exactly 0).
    col = jnp.arange(E_pad)
    col_head = jnp.where(col < E, col // hd, 0)
    maskt = (jnp.arange(nhead)[:, None] == col_head[None, :]).astype(jnp.float32)  # (nhead, E_pad)

    # Fuse the V projection and the scores projection into one weight.
    wcat = jnp.concatenate([wv, wk_eff], axis=1)                             # (emsize, E_pad+nhead)

    # bf16 (or f32) DMA for the big operands; f32 accumulation stays in-kernel.
    wcat = wcat.astype(compute_dtype)
    wo = wo.astype(compute_dtype)
    bo_eff = bo_eff.reshape(1, E_pad).astype(jnp.float32)

    itemsize = jnp.dtype(compute_dtype).itemsize
    budget = _vmem_budget_bytes()
    if block_b is None:
        block_b = _pick_block_b(B, S, emsize, E_pad, nhead, itemsize, itemsize, budget)
    block_b = max(8, _round_up(int(block_b), 8))

    # Pick the tile first, then pad the batch up to a multiple of it.
    Bp = _round_up(B, block_b)
    if Bp != B:
        x_sbe = jnp.pad(x_sbe, ((0, 0), (0, Bp - B), (0, 0)))
    x_sbe = x_sbe.astype(compute_dtype)
    grid_b = Bp // block_b

    def run(single_buffer_weights):
        def wspec(shape):
            idx = lambda b, _n=len(shape): (0,) * _n
            if single_buffer_weights:
                # Grid-invariant operands: double-buffering them is pure VMEM waste.
                return pl.BlockSpec(shape, idx, pipeline_mode=pl.Buffered(1))
            return pl.BlockSpec(shape, idx)

        return pl.pallas_call(
            _output_attention_kernel,
            out_shape=jax.ShapeDtypeStruct((Bp, E_pad), jnp.float32),
            grid_spec=pltpu.PrefetchScalarGridSpec(
                num_scalar_prefetch=0,
                grid=(grid_b,),
                in_specs=[
                    pl.BlockSpec((S, block_b, emsize), lambda b: (0, b, 0)),  # x (native layout)
                    wspec((emsize, E_pad + nhead)),                           # [Wv^T | Wk_eff]
                    wspec((nhead, E_pad)),                                    # head mask^T (f32)
                    wspec((E_pad, E_pad)),                                    # Wo^T
                    wspec((1, E_pad)),                                        # bo_eff (bv folded)
                ],
                out_specs=pl.BlockSpec((block_b, E_pad), lambda b: (b, 0)),
            ),
            compiler_params=pltpu.CompilerParams(
                dimension_semantics=("parallel",),
                vmem_limit_bytes=budget),
        )(x_sbe, wcat, maskt, wo, bo_eff)

    try:
        out = run(single_buffer_weights=True)
    except Exception:
        # TODO(synk): pipeline_mode=pl.Buffered(1) not supported on this JAX
        # version; fall back to default double-buffered weight operands.
        out = run(single_buffer_weights=False)

    return out[:B, :E]                                                       # (B, E)


def _mha_reference(x_sbe, params, nhead):
    """Pure-JAX replica of torch.nn.MultiheadAttention for the query-len-1 case."""
    S, B, _ = x_sbe.shape
    E = params["q_proj_weight"].shape[0]
    hd = E // nhead
    bq = params["in_proj_bias"][:E]
    bk = params["in_proj_bias"][E:2 * E]
    bv = params["in_proj_bias"][2 * E:]
    q = jnp.tile(params["query"], (1, B, 1))                      # (1, B, E)
    qp = q @ params["q_proj_weight"].T + bq
    kp = x_sbe @ params["k_proj_weight"].T + bk
    vp = x_sbe @ params["v_proj_weight"].T + bv
    qh = qp.reshape(1, B * nhead, hd).transpose(1, 0, 2) / math.sqrt(hd)
    kh = kp.reshape(S, B * nhead, hd).transpose(1, 0, 2)
    vh = vp.reshape(S, B * nhead, hd).transpose(1, 0, 2)
    scores = qh @ kh.transpose(0, 2, 1)                           # (B*H, 1, S)
    p = jax.nn.softmax(scores, axis=-1)
    oh = (p @ vh).transpose(1, 0, 2).reshape(1, B, E)
    out = oh @ params["out_proj_weight"].T + params["out_proj_bias"]
    return out[0]                                                 # (B, E)


if __name__ == "__main__":
    emsize, embed_dim, nhead = 32, 64, 4
    S, B = 16, 20          # B deliberately not a multiple of the batch block

    key = jax.random.PRNGKey(0)
    ks = jax.random.split(key, 8)
    params = {
        "query": jax.random.normal(ks[0], (1, 1, embed_dim), jnp.float32),
        "q_proj_weight": 0.05 * jax.random.normal(ks[1], (embed_dim, embed_dim), jnp.float32),
        "k_proj_weight": 0.05 * jax.random.normal(ks[2], (embed_dim, emsize), jnp.float32),
        "v_proj_weight": 0.05 * jax.random.normal(ks[3], (embed_dim, emsize), jnp.float32),
        "in_proj_bias": 0.05 * jax.random.normal(ks[4], (3 * embed_dim,), jnp.float32),
        "out_proj_weight": 0.05 * jax.random.normal(ks[5], (embed_dim, embed_dim), jnp.float32),
        "out_proj_bias": 0.05 * jax.random.normal(ks[6], (embed_dim,), jnp.float32),
    }
    x = jax.random.normal(ks[7], (S, B, emsize), jnp.float32)     # (seq, batch, emsize)
    y_src = jnp.zeros((S, B), jnp.float32)                        # unused by 'output_attention'

    ref = _mha_reference(x, params, nhead)

    # bf16-DMA production path (batch is padded 20 -> 2 blocks of 16: exercises
    # padding, multi-step parallel grid and lane-padded embed_dim 64 -> 128).
    out = summary_layer_output_attention(x, params, nhead)
    out = jax.block_until_ready(out)
    assert out.shape == (B, embed_dim)
    err_bf16 = jnp.max(jnp.abs(out - ref))
    assert jnp.allclose(out, ref, atol=2e-2, rtol=2e-2), f"bf16 max abs err {err_bf16}"

    # f32 path: tight validation against the PyTorch-equivalent reference.
    out32 = summary_layer_output_attention(x, params, nhead, compute_dtype=jnp.float32)
    out32 = jax.block_until_ready(out32)
    err_f32 = jnp.max(jnp.abs(out32 - ref))
    assert jnp.allclose(out32, ref, atol=2e-4, rtol=2e-4), f"f32 max abs err {err_f32}"

    print("KERNEL_OK")
</pallas_src>

<mosaic_0001>
module attributes {stable_mosaic.version = 11 : i64} {
  func.func @_output_attention_kernel(%arg0: i32, %arg1: memref<16x16x32xbf16, #tpu.memory_space<vmem>>, %arg2: memref<32x132xbf16, #tpu.memory_space<vmem>>, %arg3: memref<4x128xf32, #tpu.memory_space<vmem>>, %arg4: memref<128x128xbf16, #tpu.memory_space<vmem>>, %arg5: memref<1x128xf32, #tpu.memory_space<vmem>>, %arg6: memref<16x128xf32, #tpu.memory_space<vmem>>) attributes {dimension_semantics = [#tpu.dimension_semantics<parallel>], iteration_bounds = array<i64: 2>, scalar_prefetch = 0 : i64, scratch_operands = 0 : i64, tpu.core_type = #tpu.core_type<tc>, window_params = [{transform_indices = @transform_0, window_bounds = array<i64: 16, 16, 32>}, {pipeline_mode = #tpu.pipeline_mode<synchronous>, transform_indices = @transform_1, window_bounds = array<i64: 32, 132>}, {pipeline_mode = #tpu.pipeline_mode<synchronous>, transform_indices = @transform_2, window_bounds = array<i64: 4, 128>}, {pipeline_mode = #tpu.pipeline_mode<synchronous>, transform_indices = @transform_3, window_bounds = array<i64: 128, 128>}, {pipeline_mode = #tpu.pipeline_mode<synchronous>, transform_indices = @transform_4, window_bounds = array<i64: 1, 128>}, {transform_indices = @transform_5, window_bounds = array<i64: 16, 128>}]} {
    %c0 = arith.constant 0 : index
    %c0_0 = arith.constant 0 : index
    %c0_1 = arith.constant 0 : index
    %0 = vector.load %arg1[%c0, %c0_0, %c0_1] : memref<16x16x32xbf16, #tpu.memory_space<vmem>>, vector<16x16x32xbf16>
    %1 = vector.shape_cast %0 : vector<16x16x32xbf16> to vector<256x32xbf16>
    %c0_2 = arith.constant 0 : index
    %c0_3 = arith.constant 0 : index
    %2 = vector.load %arg2[%c0_2, %c0_3] : memref<32x132xbf16, #tpu.memory_space<vmem>>, vector<32x132xbf16>
    %cst = arith.constant dense<0.000000e+00> : vector<256x132xf32>
    %3 = tpu.matmul %1, %2, %cst {dimension_numbers = #tpu.dot_dimension_numbers<[1], [0], [0], [1], [0, 0, 1, 1], [], []>} : vector<256x32xbf16>, vector<32x132xbf16>, vector<256x132xf32> -> vector<256x132xf32>
    %4 = vector.extract_strided_slice %3 {offsets = [0, 0], sizes = [256, 128], strides = [1, 1]} : vector<256x132xf32> to vector<256x128xf32>
    %5 = vector.extract_strided_slice %3 {offsets = [0, 128], sizes = [256, 4], strides = [1, 1]} : vector<256x132xf32> to vector<256x4xf32>
    %6 = vector.shape_cast %5 : vector<256x4xf32> to vector<16x16x4xf32>
    %cst_4 = arith.constant dense<0xFF800000> : vector<16x4xf32>
    %7 = vector.multi_reduction <maximumf>, %6, %cst_4 [0] : vector<16x16x4xf32> to vector<16x4xf32>
    %8 = vector.shape_cast %7 : vector<16x4xf32> to vector<1x16x4xf32>
    %9 = vector.broadcast %8 : vector<1x16x4xf32> to vector<16x16x4xf32>
    %10 = arith.subf %6, %9 : vector<16x16x4xf32>
    %11 = math.exp %10 : vector<16x16x4xf32>
    %cst_5 = arith.constant dense<0.000000e+00> : vector<16x4xf32>
    %12 = vector.multi_reduction <add>, %11, %cst_5 [0] : vector<16x16x4xf32> to vector<16x4xf32>
    %c0_6 = arith.constant 0 : index
    %c0_7 = arith.constant 0 : index
    %13 = vector.load %arg3[%c0_6, %c0_7] : memref<4x128xf32, #tpu.memory_space<vmem>>, vector<4x128xf32>
    %14 = vector.shape_cast %11 : vector<16x16x4xf32> to vector<256x4xf32>
    %cst_8 = arith.constant dense<0.000000e+00> : vector<256x128xf32>
    %15 = tpu.matmul %14, %13, %cst_8 {dimension_numbers = #tpu.dot_dimension_numbers<[1], [0], [0], [1], [0, 0, 1, 1], [], []>} : vector<256x4xf32>, vector<4x128xf32>, vector<256x128xf32> -> vector<256x128xf32>
    %16 = arith.mulf %4, %15 : vector<256x128xf32>
    %17 = vector.shape_cast %16 : vector<256x128xf32> to vector<16x16x128xf32>
    %cst_9 = arith.constant dense<0.000000e+00> : vector<16x128xf32>
    %18 = vector.multi_reduction <add>, %17, %cst_9 [0] : vector<16x16x128xf32> to vector<16x128xf32>
    %cst_10 = arith.constant dense<0.000000e+00> : vector<16x128xf32>
    %19 = tpu.matmul %12, %13, %cst_10 {dimension_numbers = #tpu.dot_dimension_numbers<[1], [0], [0], [1], [0, 0, 1, 1], [], []>} : vector<16x4xf32>, vector<4x128xf32>, vector<16x128xf32> -> vector<16x128xf32>
    %20 = arith.divf %18, %19 : vector<16x128xf32>
    %21 = arith.truncf %20 : vector<16x128xf32> to vector<16x128xbf16>
    %c0_11 = arith.constant 0 : index
    %c0_12 = arith.constant 0 : index
    %22 = vector.load %arg4[%c0_11, %c0_12] : memref<128x128xbf16, #tpu.memory_space<vmem>>, vector<128x128xbf16>
    %cst_13 = arith.constant dense<0.000000e+00> : vector<16x128xf32>
    %23 = tpu.matmul %21, %22, %cst_13 {dimension_numbers = #tpu.dot_dimension_numbers<[1], [0], [0], [1], [0, 0, 1, 1], [], []>} : vector<16x128xbf16>, vector<128x128xbf16>, vector<16x128xf32> -> vector<16x128xf32>
    %c0_14 = arith.constant 0 : index
    %c0_15 = arith.constant 0 : index
    %24 = vector.load %arg5[%c0_14, %c0_15] : memref<1x128xf32, #tpu.memory_space<vmem>>, vector<1x128xf32>
    %25 = vector.broadcast %24 : vector<1x128xf32> to vector<16x128xf32>
    %26 = arith.addf %23, %25 : vector<16x128xf32>
    %c0_16 = arith.constant 0 : index
    %c0_17 = arith.constant 0 : index
    %27 = vector.load %arg6[%c0_16, %c0_17] : memref<16x128xf32, #tpu.memory_space<vmem>>, vector<16x128xf32>
    tpu.vector_store %arg6[%c0_16, %c0_17], %26 {strides = array<i32>} : memref<16x128xf32, #tpu.memory_space<vmem>>, vector<16x128xf32>,
    return
  }
  func.func @transform_0(%arg0: i32) -> (i32, i32, i32) {
    %c0_i32 = arith.constant 0 : i32
    %c0_i32_0 = arith.constant 0 : i32
    %c0_i32_1 = arith.constant 0 : i32
    return %c0_i32, %arg0, %c0_i32_0 : i32, i32, i32
  }
  func.func @transform_1(%arg0: i32) -> (i32, i32) {
    %c0_i32 = arith.constant 0 : i32
    %c0_i32_0 = arith.constant 0 : i32
    %c0_i32_1 = arith.constant 0 : i32
    return %c0_i32, %c0_i32_0 : i32, i32
  }
  func.func @transform_2(%arg0: i32) -> (i32, i32) {
    %c0_i32 = arith.constant 0 : i32
    %c0_i32_0 = arith.constant 0 : i32
    %c0_i32_1 = arith.constant 0 : i32
    return %c0_i32, %c0_i32_0 : i32, i32
  }
  func.func @transform_3(%arg0: i32) -> (i32, i32) {
    %c0_i32 = arith.constant 0 : i32
    %c0_i32_0 = arith.constant 0 : i32
    %c0_i32_1 = arith.constant 0 : i32
    return %c0_i32, %c0_i32_0 : i32, i32
  }
  func.func @transform_4(%arg0: i32) -> (i32, i32) {
    %c0_i32 = arith.constant 0 : i32
    %c0_i32_0 = arith.constant 0 : i32
    %c0_i32_1 = arith.constant 0 : i32
    return %c0_i32, %c0_i32_0 : i32, i32
  }
  func.func @transform_5(%arg0: i32) -> (i32, i32) {
    %c0_i32 = arith.constant 0 : i32
    %c0_i32_0 = arith.constant 0 : i32
    return %arg0, %c0_i32 : i32, i32
  }
}

module attributes {stable_mosaic.version = 11 : i64} {
  func.func @_output_attention_kernel(%arg0: i32, %arg1: memref<16x16x32xbf16, #tpu.memory_space<vmem>>, %arg2: memref<32x132xbf16, #tpu.memory_space<vmem>>, %arg3: memref<4x128xf32, #tpu.memory_space<vmem>>, %arg4: memref<128x128xbf16, #tpu.memory_space<vmem>>, %arg5: memref<1x128xf32, #tpu.memory_space<vmem>>, %arg6: memref<16x128xf32, #tpu.memory_space<vmem>>) attributes {dimension_semantics = [#tpu.dimension_semantics<parallel>], iteration_bounds = array<i64: 2>, scalar_prefetch = 0 : i64, scratch_operands = 0 : i64, tpu.core_type = #tpu.core_type<tc>, window_params = [{transform_indices = @transform_0, window_bounds = array<i64: 16, 16, 32>}, {pipeline_mode = #tpu.pipeline_mode<synchronous>, transform_indices = @transform_1, window_bounds = array<i64: 32, 132>}, {pipeline_mode = #tpu.pipeline_mode<synchronous>, transform_indices = @transform_2, window_bounds = array<i64: 4, 128>}, {pipeline_mode = #tpu.pipeline_mode<synchronous>, transform_indices = @transform_3, window_bounds = array<i64: 128, 128>}, {pipeline_mode = #tpu.pipeline_mode<synchronous>, transform_indices = @transform_4, window_bounds = array<i64: 1, 128>}, {transform_indices = @transform_5, window_bounds = array<i64: 16, 128>}]} {
    %c0 = arith.constant 0 : index
    %c0_0 = arith.constant 0 : index
    %c0_1 = arith.constant 0 : index
    %0 = vector.load %arg1[%c0, %c0_0, %c0_1] : memref<16x16x32xbf16, #tpu.memory_space<vmem>>, vector<16x16x32xbf16>
    %1 = vector.shape_cast %0 : vector<16x16x32xbf16> to vector<256x32xbf16>
    %c0_2 = arith.constant 0 : index
    %c0_3 = arith.constant 0 : index
    %2 = vector.load %arg2[%c0_2, %c0_3] : memref<32x132xbf16, #tpu.memory_space<vmem>>, vector<32x132xbf16>
    %cst = arith.constant dense<0.000000e+00> : vector<256x132xf32>
    %3 = tpu.matmul %1, %2, %cst {dimension_numbers = #tpu.dot_dimension_numbers<[1], [0], [0], [1], [0, 0, 1, 1], [], []>} : vector<256x32xbf16>, vector<32x132xbf16>, vector<256x132xf32> -> vector<256x132xf32>
    %4 = vector.extract_strided_slice %3 {offsets = [0, 0], sizes = [256, 128], strides = [1, 1]} : vector<256x132xf32> to vector<256x128xf32>
    %5 = vector.extract_strided_slice %3 {offsets = [0, 128], sizes = [256, 4], strides = [1, 1]} : vector<256x132xf32> to vector<256x4xf32>
    %6 = vector.shape_cast %5 : vector<256x4xf32> to vector<16x16x4xf32>
    %cst_4 = arith.constant dense<0xFF800000> : vector<16x4xf32>
    %7 = vector.multi_reduction <maximumf>, %6, %cst_4 [0] : vector<16x16x4xf32> to vector<16x4xf32>
    %8 = vector.shape_cast %7 : vector<16x4xf32> to vector<1x16x4xf32>
    %9 = vector.broadcast %8 : vector<1x16x4xf32> to vector<16x16x4xf32>
    %10 = arith.subf %6, %9 : vector<16x16x4xf32>
    %11 = math.exp %10 : vector<16x16x4xf32>
    %cst_5 = arith.constant dense<0.000000e+00> : vector<16x4xf32>
    %12 = vector.multi_reduction <add>, %11, %cst_5 [0] : vector<16x16x4xf32> to vector<16x4xf32>
    %c0_6 = arith.constant 0 : index
    %c0_7 = arith.constant 0 : index
    %13 = vector.load %arg3[%c0_6, %c0_7] : memref<4x128xf32, #tpu.memory_space<vmem>>, vector<4x128xf32>
    %14 = vector.shape_cast %11 : vector<16x16x4xf32> to vector<256x4xf32>
    %cst_8 = arith.constant dense<0.000000e+00> : vector<256x128xf32>
    %15 = tpu.matmul %14, %13, %cst_8 {dimension_numbers = #tpu.dot_dimension_numbers<[1], [0], [0], [1], [0, 0, 1, 1], [], []>} : vector<256x4xf32>, vector<4x128xf32>, vector<256x128xf32> -> vector<256x128xf32>
    %16 = arith.mulf %4, %15 : vector<256x128xf32>
    %17 = vector.shape_cast %16 : vector<256x128xf32> to vector<16x16x128xf32>
    %cst_9 = arith.constant dense<0.000000e+00> : vector<16x128xf32>
    %18 = vector.multi_reduction <add>, %17, %cst_9 [0] : vector<16x16x128xf32> to vector<16x128xf32>
    %cst_10 = arith.constant dense<0.000000e+00> : vector<16x128xf32>
    %19 = tpu.matmul %12, %13, %cst_10 {dimension_numbers = #tpu.dot_dimension_numbers<[1], [0], [0], [1], [0, 0, 1, 1], [], []>} : vector<16x4xf32>, vector<4x128xf32>, vector<16x128xf32> -> vector<16x128xf32>
    %20 = arith.divf %18, %19 : vector<16x128xf32>
    %21 = arith.truncf %20 : vector<16x128xf32> to vector<16x128xbf16>
    %c0_11 = arith.constant 0 : index
    %c0_12 = arith.constant 0 : index
    %22 = vector.load %arg4[%c0_11, %c0_12] : memref<128x128xbf16, #tpu.memory_space<vmem>>, vector<128x128xbf16>
    %cst_13 = arith.constant dense<0.000000e+00> : vector<16x128xf32>
    %23 = tpu.matmul %21, %22, %cst_13 {dimension_numbers = #tpu.dot_dimension_numbers<[1], [0], [0], [1], [0, 0, 1, 1], [], []>} : vector<16x128xbf16>, vector<128x128xbf16>, vector<16x128xf32> -> vector<16x128xf32>
    %c0_14 = arith.constant 0 : index
    %c0_15 = arith.constant 0 : index
    %24 = vector.load %arg5[%c0_14, %c0_15] : memref<1x128xf32, #tpu.memory_space<vmem>>, vector<1x128xf32>
    %25 = vector.broadcast %24 : vector<1x128xf32> to vector<16x128xf32>
    %26 = arith.addf %23, %25 : vector<16x128xf32>
    %c0_16 = arith.constant 0 : index
    %c0_17 = arith.constant 0 : index
    %27 = vector.load %arg6[%c0_16, %c0_17] : memref<16x128xf32, #tpu.memory_space<vmem>>, vector<16x128xf32>
    tpu.vector_store %arg6[%c0_16, %c0_17], %26 {strides = array<i32>} : memref<16x128xf32, #tpu.memory_space<vmem>>, vector<16x128xf32>,
    return
  }
  func.func @transform_0(%arg0: i32) -> (i32, i32, i32) {
    %c0_i32 = arith.constant 0 : i32
    %c0_i32_0 = arith.constant 0 : i32
    %c0_i32_1 = arith.constant 0 : i32
    return %c0_i32, %arg0, %c0_i32_0 : i32, i32, i32
  }
  func.func @transform_1(%arg0: i32) -> (i32, i32) {
    %c0_i32 = arith.constant 0 : i32
    %c0_i32_0 = arith.constant 0 : i32
    %c0_i32_1 = arith.constant 0 : i32
    return %c0_i32, %c0_i32_0 : i32, i32
  }
  func.func @transform_2(%arg0: i32) -> (i32, i32) {
    %c0_i32 = arith.constant 0 : i32
    %c0_i32_0 = arith.constant 0 : i32
    %c0_i32_1 = arith.constant 0 : i32
    return %c0_i32, %c0_i32_0 : i32, i32
  }
  func.func @transform_3(%arg0: i32) -> (i32, i32) {
    %c0_i32 = arith.constant 0 : i32
    %c0_i32_0 = arith.constant 0 : i32
    %c0_i32_1 = arith.constant 0 : i32
    return %c0_i32, %c0_i32_0 : i32, i32
  }
  func.func @transform_4(%arg0: i32) -> (i32, i32) {
    %c0_i32 = arith.constant 0 : i32
    %c0_i32_0 = arith.constant 0 : i32
    %c0_i32_1 = arith.constant 0 : i32
    return %c0_i32, %c0_i32_0 : i32, i32
  }
  func.func @transform_5(%arg0: i32) -> (i32, i32) {
    %c0_i32 = arith.constant 0 : i32
    %c0_i32_0 = arith.constant 0 : i32
    return %arg0, %c0_i32 : i32, i32
  }
}

</mosaic_0001>

<llo_original>
// kernel: tpu_custom_call.1
$region0: #{tpu_custom_call.1}
  #allocation0 [shape = 'u32[]', space=smem, size = 0x4, offset = 0x4, fixed_abs, tag = 'smem constant byte address 0x4 - core index']
  #allocation1 [shape = 'u32[144,128]{1,0:T(1,128)}', space=vmem, size = 0x12000, scoped, tag = 'internal scratch']
  #allocation11 [shape = 's32[]', space=sflag, size = 0x4, offset = 0, fixed_abs, tag = 'sflag constant byte address 0x0 - dummy sync flag']
  %s0 = inlined_call_operand.hbm [shape: bf16[16,32,32], index: 0, kind: input, shape index: {}]
  %s1 = inlined_call_operand.hbm [shape: bf16[32,132], index: 1, kind: input, shape index: {}]
  %s2 = inlined_call_operand.hbm [shape: f32[4,128], index: 2, kind: input, shape index: {}]
  %s3 = inlined_call_operand.hbm [shape: bf16[128,128], index: 3, kind: input, shape index: {}]
  %s4 = inlined_call_operand.vmem [shape: f32[1,128], index: 4, kind: input, shape index: {}]
  %s5 = inlined_call_operand.hbm [shape: f32[32,128], index: 5, kind: output, shape index: {}]
  %s6 = sld [smem:[#allocation0]]
  $region69: #{tpu_custom_call.1} parent=0
    _
  %s8 = ssub.s32 1, %s6
  %s9 = scalar_select 0, %s8, %s6
  $region1: #{tpu_custom_call.1} parent=0
    #allocation2 [shape = 'u8[131072]{0}', space=vmem, size = 0x20000, scoped, tag = 'input window, operand 0']
    #allocation3 [shape = 's32[2]{0}', space=sflag, size = 0x8, scoped, tag = 'scoped memory for tpu_custom_call.1']
    #allocation4 [shape = 's32[2]{0}', space=sflag, size = 0x8, scoped, tag = 'scoped memory for tpu_custom_call.1']
    #allocation5 [shape = 'u8[16384]{0}', space=vmem, size = 0x4000, scoped, tag = 'input window, operand 1, single buffered']
    #allocation6 [shape = 's32[1]{0}', space=sflag, size = 0x4, scoped, tag = 'scoped memory for tpu_custom_call.1']
    #allocation7 [shape = 'u8[2048]{0}', space=vmem, size = 0x800, scoped, tag = 'input window, operand 2, single buffered']
    #allocation8 [shape = 'u8[32768]{0}', space=vmem, size = 0x8000, scoped, tag = 'input window, operand 3, single buffered']
    #allocation9 [shape = 's32[1]{0}', space=sflag, size = 0x4, scoped, tag = 'scoped memory for tpu_custom_call.1']
    #allocation10 [shape = 'u8[16384]{0}', space=vmem, size = 0x4000, scoped, tag = 'output window, operand 0']
    %10 = vsyncpa [#allocation3], 0
    %s11 = scalar_lea.sflag [#allocation3], 1
    %12 = vsyncpa %s11, 0
    %13 = vsyncpa [#allocation6], 0
    %14 = vsyncpa [#allocation9], 0
    %15 = vsyncpa [#allocation4], 0
    %s16 = scalar_lea.sflag [#allocation4], 1
    %17 = vsyncpa %s16, 0
    loop: start=0, step=1, limit=4
    $region2: #{tpu_custom_call.1} parent=1 // loop_pre_header
      _
    $region3: #{tpu_custom_call.1} parent=1 // loop_header
      %s19 = sphi 0, %s23
      %p20 = scmp.ge.s32.totalorder %s19, 4
      %s29 = sphi 0, %s31
      %s32 = sphi 0, %s29
      %s33 = sphi 0, %s32
      %s49 = sphi 0, %s33
      %s53 = sphi 0, %s53
      %s55 = sphi 0, %s53
      %s56 = sphi 0, %s55
      %s70 = sphi 0, %s56
      %s74 = sphi 0, %s74
      %s76 = sphi 0, %s74
      %s77 = sphi 0, %s76
      %s91 = sphi 0, %s77
      %s95 = sphi 0, %s95
      %s97 = sphi 0, %s95
      %s98 = sphi 0, %s97
      %s112 = sphi 0, %s98
      %s116 = sphi 0, %s116
      %s118 = sphi 0, %s116
      %s119 = sphi 0, %s118
      %s133 = sphi 0, %s119
      %s139 = sphi 0, %s141
      %s142 = sphi 0, %s139
      %s143 = sphi 0, %s142
      %s159 = sphi 0, %s143
    $region4: #{tpu_custom_call.1} parent=1 // loop_header_branch
      %22 = sbr.rel (%p20) target = $region8
    $region5: #{tpu_custom_call.1} parent=1 // loop_body
      %s24 = ssub.s32 %s19, 1
      %s25 = ssub.s32 %s19, 2
      %s26 = sadd.s32 %s19, 1
      %s27 = ssub.s32 %s19, %s26
      %p28 = scmp.eq.s32.totalorder %s27, 0
      %s30 = sadd.s32 %s29, 1
      %s31 = scalar_select %p28, %s29, %s30
      %p34 = pneg %p28
      %p35 = scmp.eq.s32.totalorder %s19, 1
      %p36 = por %p34, %p35
      %p37 = scmp.ne.s32.totalorder %s29, %s32
      %p38 = scmp.eq.s32.totalorder %s19, 0
      %p39 = por %p37, %p38
      %p40 = scmp.ne.s32.totalorder %s29, %s32
      %p41 = scmp.eq.s32.totalorder %s24, 1
      %p42 = por %p40, %p41
      %p43 = scmp.ne.s32.totalorder %s32, %s33
      %p44 = scmp.eq.s32.totalorder %s24, 0
      %p45 = por %p43, %p44
      %p46 = scmp.ne.s32.totalorder %s32, %s33
      %p47 = scmp.eq.s32.totalorder %s25, 1
      %p48 = por %p46, %p47
      %p50 = scmp.ne.s32.totalorder %s33, %s49
      %p51 = scmp.eq.s32.totalorder %s25, 0
      %p52 = por %p50, %p51
      %s54 = sadd.s32 %s53, 1
      %p57 = scmp.eq.s32.totalorder %s19, 1
      %p58 = scmp.ne.s32.totalorder %s53, %s55
      %p59 = scmp.eq.s32.totalorder %s19, 0
      %p60 = por %p58, %p59
      %p61 = scmp.ne.s32.totalorder %s53, %s55
      %p62 = scmp.eq.s32.totalorder %s24, 1
      %p63 = por %p61, %p62
      %p64 = scmp.ne.s32.totalorder %s55, %s56
      %p65 = scmp.eq.s32.totalorder %s24, 0
      %p66 = por %p64, %p65
      %p67 = scmp.ne.s32.totalorder %s55, %s56
      %p68 = scmp.eq.s32.totalorder %s25, 1
      %p69 = por %p67, %p68
      %p71 = scmp.ne.s32.totalorder %s56, %s70
      %p72 = scmp.eq.s32.totalorder %s25, 0
      %p73 = por %p71, %p72
      %s75 = sadd.s32 %s74, 1
      %p78 = scmp.eq.s32.totalorder %s19, 1
      %p79 = scmp.ne.s32.totalorder %s74, %s76
      %p80 = scmp.eq.s32.totalorder %s19, 0
      %p81 = por %p79, %p80
      %p82 = scmp.ne.s32.totalorder %s74, %s76
      %p83 = scmp.eq.s32.totalorder %s24, 1
      %p84 = por %p82, %p83
      %p85 = scmp.ne.s32.totalorder %s76, %s77
      %p86 = scmp.eq.s32.totalorder %s24, 0
      %p87 = por %p85, %p86
      %p88 = scmp.ne.s32.totalorder %s76, %s77
      %p89 = scmp.eq.s32.totalorder %s25, 1
      %p90 = por %p88, %p89
      %p92 = scmp.ne.s32.totalorder %s77, %s91
      %p93 = scmp.eq.s32.totalorder %s25, 0
      %p94 = por %p92, %p93
      %s96 = sadd.s32 %s95, 1
      %p99 = scmp.eq.s32.totalorder %s19, 1
      %p100 = scmp.ne.s32.totalorder %s95, %s97
      %p101 = scmp.eq.s32.totalorder %s19, 0
      %p102 = por %p100, %p101
      %p103 = scmp.ne.s32.totalorder %s95, %s97
      %p104 = scmp.eq.s32.totalorder %s24, 1
      %p105 = por %p103, %p104
      %p106 = scmp.ne.s32.totalorder %s97, %s98
      %p107 = scmp.eq.s32.totalorder %s24, 0
      %p108 = por %p106, %p107
      %p109 = scmp.ne.s32.totalorder %s97, %s98
      %p110 = scmp.eq.s32.totalorder %s25, 1
      %p111 = por %p109, %p110
      %p113 = scmp.ne.s32.totalorder %s98, %s112
      %p114 = scmp.eq.s32.totalorder %s25, 0
      %p115 = por %p113, %p114
      %s117 = sadd.s32 %s116, 1
      %p120 = scmp.eq.s32.totalorder %s19, 1
      %p121 = scmp.ne.s32.totalorder %s116, %s118
      %p122 = scmp.eq.s32.totalorder %s19, 0
      %p123 = por %p121, %p122
      %p124 = scmp.ne.s32.totalorder %s116, %s118
      %p125 = scmp.eq.s32.totalorder %s24, 1
      %p126 = por %p124, %p125
      %p127 = scmp.ne.s32.totalorder %s118, %s119
      %p128 = scmp.eq.s32.totalorder %s24, 0
      %p129 = por %p127, %p128
      %p130 = scmp.ne.s32.totalorder %s118, %s119
      %p131 = scmp.eq.s32.totalorder %s25, 1
      %p132 = por %p130, %p131
      %p134 = scmp.ne.s32.totalorder %s119, %s133
      %p135 = scmp.eq.s32.totalorder %s25, 0
      %p136 = por %p134, %p135
      %s137 = ssub.s32 %s19, %s26
      %p138 = scmp.eq.s32.totalorder %s137, 0
      %s140 = sadd.s32 %s139, 1
      %s141 = scalar_select %p138, %s139, %s140
      %p144 = pneg %p138
      %p145 = scmp.eq.s32.totalorder %s19, 1
      %p146 = por %p144, %p145
      %p147 = scmp.ne.s32.totalorder %s139, %s142
      %p148 = scmp.eq.s32.totalorder %s19, 0
      %p149 = por %p147, %p148
      %p150 = scmp.ne.s32.totalorder %s139, %s142
      %p151 = scmp.eq.s32.totalorder %s24, 1
      %p152 = por %p150, %p151
      %p153 = scmp.ne.s32.totalorder %s142, %s143
      %p154 = scmp.eq.s32.totalorder %s24, 0
      %p155 = por %p153, %p154
      %p156 = scmp.ne.s32.totalorder %s142, %s143
      %p157 = scmp.eq.s32.totalorder %s25, 1
      %p158 = por %p156, %p157
      %p160 = scmp.ne.s32.totalorder %s143, %s159
      %p161 = scmp.eq.s32.totalorder %s25, 0
      %p162 = por %p160, %p161
      %p163 = scmp.le.s32.totalorder 1, %s19
      %p164 = scmp.lt.s32.totalorder %s19, 3
      %p165 = pnand %p163, %p164
      %p166 = pneg %p165
      // Predicated region
      $region9: #{tpu_custom_call.1} parent=5 // pred_check
        _
      $region10: #{tpu_custom_call.1} parent=5 // pred_check_branch
        %168 = sbr.rel (%p165) target = $region12
      $region11: #{tpu_custom_call.1} parent=5 // pred_region
        %s169 = ssub.s32 %s19, 1
        // Predicated region
        $region13: #{tpu_custom_call.1} parent=11 // pred_check
          %p170 = pneg %p66
        $region14: #{tpu_custom_call.1} parent=11 // pred_check_branch
          %172 = sbr.rel (%p170) target = $region16
        $region15: #{tpu_custom_call.1} parent=11 // pred_region
          %s174 = ssub.s32 512, 512
          %175 = vsyncadd [#allocation6], %s174
          %s176 = sshll.u32 [#allocation5], 4
          %s177 = int_to_ptr.vmem [resolvable:$true] %s176
          %182 = dma.hbm_to_vmem [thread:$0]  %s1, 512, %s177, [#allocation6], 128, 128, 8
        $region16: #{tpu_custom_call.1} parent=11 // pred_fallthru
          _
        // Predicated region
        $region17: #{tpu_custom_call.1} parent=11 // pred_check
          %p183 = pneg %p87
        $region18: #{tpu_custom_call.1} parent=11 // pred_check_branch
          %185 = sbr.rel (%p183) target = $region20
        $region19: #{tpu_custom_call.1} parent=11 // pred_region
          %s187 = ssub.s32 64, 64
          %188 = vsyncadd [#allocation6], %s187
          %s190 = sshll.u32 [#allocation7], 4
          %s191 = int_to_ptr.vmem [resolvable:$true] %s190
          %193 = dma.hbm_to_vmem [thread:$0]  %s2, 64, %s191, [#allocation6]
        $region20: #{tpu_custom_call.1} parent=11 // pred_fallthru
          _
        // Predicated region
        $region21: #{tpu_custom_call.1} parent=11 // pred_check
          %p194 = pneg %p108
        $region22: #{tpu_custom_call.1} parent=11 // pred_check_branch
          %196 = sbr.rel (%p194) target = $region24
        $region23: #{tpu_custom_call.1} parent=11 // pred_region
          %s198 = ssub.s32 1024, 1024
          %199 = vsyncadd [#allocation9], %s198
          %s200 = sshll.u32 [#allocation8], 4
          %s201 = int_to_ptr.vmem [resolvable:$true] %s200
          %206 = dma.hbm_to_vmem [thread:$0]  %s3, 1024, %s201, [#allocation9], 64, 64, 4
        $region24: #{tpu_custom_call.1} parent=11 // pred_fallthru
          _
        // Predicated region
        $region25: #{tpu_custom_call.1} parent=11 // pred_check
          %p207 = pneg %p129
        $region26: #{tpu_custom_call.1} parent=11 // pred_check_branch
          %209 = sbr.rel (%p207) target = $region28
        $region27: #{tpu_custom_call.1} parent=11 // pred_region
          _
        $region28: #{tpu_custom_call.1} parent=11 // pred_fallthru
          _
      $region12: #{tpu_custom_call.1} parent=5 // pred_fallthru
        _
      %p210 = scmp.lt.s32.totalorder %s19, 2
      // Predicated region
      $region29: #{tpu_custom_call.1} parent=5 // pred_check
        %p211 = pneg %p210
      $region30: #{tpu_custom_call.1} parent=5 // pred_check_branch
        %213 = sbr.rel (%p211) target = $region32
      $region31: #{tpu_custom_call.1} parent=5 // pred_region
        // Predicated region
        $region33: #{tpu_custom_call.1} parent=31 // pred_check
          %p214 = pneg %p39
        $region34: #{tpu_custom_call.1} parent=31 // pred_check_branch
          %216 = sbr.rel (%p214) target = $region36
        $region35: #{tpu_custom_call.1} parent=31 // pred_region
          #allocation12 [shape = 'u32[6]{0}', space=smem, size = 0x18, scoped, tag = 'DMA stride descriptor']
          %s217 = sand.u32 %s29, 1
          %s218 = scalar_lea.sflag [#allocation3], %s217
          %s219 = sand.u32 %s29, 1
          %s220 = smul.addr %s219, 128
          %s221 = scalar_lea.vmem [#allocation2], %s220
          %s222 = smul.u32 2, %s19
          %s224 = ssub.s32 2048, 2048
          %225 = vsyncadd %s218, %s224
          %s226 = smul.addr %s222, 64
          %s227 = scalar_lea.hbm %s0, %s226
          %s229 = sshll.u32 1, 14
          %s230 = sxor.u32 4294967295, %s229
          %s232 = sld [smem:[#allocation0]]
          %s233 = sadd.s32 2, %s232
          %s235 = sshll.u32 7, 26
          %s236 = sxor.u32 4294967295, %s235
          %s237 = sand.u32 0, %s236
          %s238 = sshll.u32 %s233, 26
          %s239 = sor.u32 %s237, %s238
          %s240 = sshll.u32 %s221, 4
          %s241 = int_to_ptr.vmem [resolvable:$true] %s240
          %247 = sst [smem:[#allocation12]] 256
          %s248 = scalar_lea.smem [#allocation12], 1
          %249 = sst [smem:[%s248]] 128
          %s250 = scalar_lea.smem [#allocation12], 2
          %251 = sst [smem:[%s250]] 2
          %s252 = scalar_lea.smem [#allocation12], 3
          %253 = sst [smem:[%s252]] 64
          %s254 = scalar_lea.smem [#allocation12], 4
          %255 = sst [smem:[%s254]] 64
          %s256 = scalar_lea.smem [#allocation12], 5
          %257 = sst [smem:[%s256]] 4
          %259 = dma.general %s227, 2048, %s241, %s218, 131072, [#allocation12], %s239, 0
        $region36: #{tpu_custom_call.1} parent=31 // pred_fallthru
          _
      $region32: #{tpu_custom_call.1} parent=5 // pred_fallthru
        _
      %p260 = scmp.le.s32.totalorder 1, %s19
      %p261 = scmp.lt.s32.totalorder %s19, 3
      %p262 = pnand %p260, %p261
      %p263 = pneg %p262
      // Predicated region
      $region37: #{tpu_custom_call.1} parent=5 // pred_check
        _
      $region38: #{tpu_custom_call.1} parent=5 // pred_check_branch
        %265 = sbr.rel (%p262) target = $region40
      $region39: #{tpu_custom_call.1} parent=5 // pred_region
        %s266 = ssub.s32 %s19, 1
        %s267 = sand.u32 %s32, 1
        %s268 = scalar_lea.sflag [#allocation3], %s267
        %s269 = sand.u32 %s32, 1
        %s270 = smul.addr %s269, 128
        %s271 = scalar_lea.vmem [#allocation2], %s270
        // Predicated region
        $region41: #{tpu_custom_call.1} parent=39 // pred_check
          %p272 = pneg %p45
        $region42: #{tpu_custom_call.1} parent=39 // pred_check_branch
          %274 = sbr.rel (%p272) target = $region44
        $region43: #{tpu_custom_call.1} parent=39 // pred_region
          %275 = dma.done %s268, 2048
        $region44: #{tpu_custom_call.1} parent=39 // pred_fallthru
          _
        // Predicated region
        $region45: #{tpu_custom_call.1} parent=39 // pred_check
          %p276 = pneg %p66
        $region46: #{tpu_custom_call.1} parent=39 // pred_check_branch
          %278 = sbr.rel (%p276) target = $region48
        $region47: #{tpu_custom_call.1} parent=39 // pred_region
          %279 = dma.done [#allocation6], 512
        $region48: #{tpu_custom_call.1} parent=39 // pred_fallthru
          _
        // Predicated region
        $region49: #{tpu_custom_call.1} parent=39 // pred_check
          %p280 = pneg %p87
        $region50: #{tpu_custom_call.1} parent=39 // pred_check_branch
          %282 = sbr.rel (%p280) target = $region52
        $region51: #{tpu_custom_call.1} parent=39 // pred_region
          %283 = dma.done [#allocation6], 64
        $region52: #{tpu_custom_call.1} parent=39 // pred_fallthru
          _
        // Predicated region
        $region53: #{tpu_custom_call.1} parent=39 // pred_check
          %p284 = pneg %p108
        $region54: #{tpu_custom_call.1} parent=39 // pred_check_branch
          %286 = sbr.rel (%p284) target = $region56
        $region55: #{tpu_custom_call.1} parent=39 // pred_region
          %287 = dma.done [#allocation9], 1024
        $region56: #{tpu_custom_call.1} parent=39 // pred_fallthru
          _
        %s288 = sand.u32 %s32, 1
        %s289 = scalar_lea.sflag [#allocation3], %s288
        %s290 = sand.u32 %s32, 1
        %s291 = smul.addr %s290, 128
        %s292 = scalar_lea.vmem [#allocation2], %s291
        %p293 = pneg %p45
        %p294 = pneg %p42
        %p295 = pneg %p66
        %p296 = pneg %p63
        %p297 = pneg %p87
        %p298 = pneg %p84
        %p299 = pneg %p108
        %p300 = pneg %p105
        %p301 = pneg %p129
        %p302 = pneg %p126
        %p303 = pneg %p155
        %p304 = pneg %p152
        %s305 = sand.u32 %s142, 1
        %s306 = scalar_lea.sflag [#allocation4], %s305
        %s307 = sand.u32 %s142, 1
        %s308 = smul.addr %s307, 16
        %s309 = scalar_lea.vmem [#allocation10], %s308
        %s310 = smul.u32 2, %s24
        %s311 = smul.u32 2, %s24
        %v313 = vld [vmem:[%s271] sm:$0xf]
        %v314 = vld [vmem:[%s271 + $0x4] sm:$0xf]
        %v315 = vld [vmem:[%s271 + $0x8] sm:$0xf]
        %v316 = vld [vmem:[%s271 + $0xc] sm:$0xf]
        %v317 = vld [vmem:[%s271 + $0x10] sm:$0xf]
        %v318 = vld [vmem:[%s271 + $0x14] sm:$0xf]
        %v319 = vld [vmem:[%s271 + $0x18] sm:$0xf]
        %v320 = vld [vmem:[%s271 + $0x1c] sm:$0xf]
        %v321 = vld [vmem:[%s271 + $0x20] sm:$0xf]
        %v322 = vld [vmem:[%s271 + $0x24] sm:$0xf]
        %v323 = vld [vmem:[%s271 + $0x28] sm:$0xf]
        %v324 = vld [vmem:[%s271 + $0x2c] sm:$0xf]
        %v325 = vld [vmem:[%s271 + $0x30] sm:$0xf]
        %v326 = vld [vmem:[%s271 + $0x34] sm:$0xf]
        %v327 = vld [vmem:[%s271 + $0x38] sm:$0xf]
        %v328 = vld [vmem:[%s271 + $0x3c] sm:$0xf]
        %v329 = vld [vmem:[%s271 + $0x40] sm:$0xf]
        %v330 = vld [vmem:[%s271 + $0x44] sm:$0xf]
        %v331 = vld [vmem:[%s271 + $0x48] sm:$0xf]
        %v332 = vld [vmem:[%s271 + $0x4c] sm:$0xf]
        %v333 = vld [vmem:[%s271 + $0x50] sm:$0xf]
        %v334 = vld [vmem:[%s271 + $0x54] sm:$0xf]
        %v335 = vld [vmem:[%s271 + $0x58] sm:$0xf]
        %v336 = vld [vmem:[%s271 + $0x5c] sm:$0xf]
        %v337 = vld [vmem:[%s271 + $0x60] sm:$0xf]
        %v338 = vld [vmem:[%s271 + $0x64] sm:$0xf]
        %v339 = vld [vmem:[%s271 + $0x68] sm:$0xf]
        %v340 = vld [vmem:[%s271 + $0x6c] sm:$0xf]
        %v341 = vld [vmem:[%s271 + $0x70] sm:$0xf]
        %v342 = vld [vmem:[%s271 + $0x74] sm:$0xf]
        %v343 = vld [vmem:[%s271 + $0x78] sm:$0xf]
        %v344 = vld [vmem:[%s271 + $0x7c] sm:$0xf]
        %v345 = vld [vmem:[#allocation5] sm:$0xff]
        %v346 = vld [vmem:[#allocation5 + $0x8] sm:$0xff]
        %v347 = vld [vmem:[#allocation5 + $0x10] sm:$0xff]
        %v348 = vld [vmem:[#allocation5 + $0x18] sm:$0xff]
        %v381 = vunpack.c.l.b16 %v313
        %v382 = vunpack.c.l.b16 %v314
        %v383 = vunpack.c.l.b16 %v315
        %v384 = vunpack.c.l.b16 %v316
        %v385 = vunpack.c.l.b16 %v317
        %v386 = vunpack.c.l.b16 %v318
        %v387 = vunpack.c.l.b16 %v319
        %v388 = vunpack.c.l.b16 %v320
        %v389 = vunpack.c.l.b16 %v321
        %v390 = vunpack.c.l.b16 %v322
        %v391 = vunpack.c.l.b16 %v323
        %v392 = vunpack.c.l.b16 %v324
        %v393 = vunpack.c.l.b16 %v325
        %v394 = vunpack.c.l.b16 %v326
        %v395 = vunpack.c.l.b16 %v327
        %v396 = vunpack.c.l.b16 %v328
        %v397 = vunpack.c.l.b16 %v329
        %v398 = vunpack.c.l.b16 %v330
        %v399 = vunpack.c.l.b16 %v331
        %v400 = vunpack.c.l.b16 %v332
        %v401 = vunpack.c.l.b16 %v333
        %v402 = vunpack.c.l.b16 %v334
        %v403 = vunpack.c.l.b16 %v335
        %v404 = vunpack.c.l.b16 %v336
        %v405 = vunpack.c.l.b16 %v337
        %v406 = vunpack.c.l.b16 %v338
        %v407 = vunpack.c.l.b16 %v339
        %v408 = vunpack.c.l.b16 %v340
        %v409 = vunpack.c.l.b16 %v341
        %v410 = vunpack.c.l.b16 %v342
        %v411 = vunpack.c.l.b16 %v343
        %v412 = vunpack.c.l.b16 %v344
        %v413 = vpack.c.b16 %v382, %v381
        %v414 = vpack.c.b16 %v384, %v383
        %v415 = vpack.c.b16 %v386, %v385
        %v416 = vpack.c.b16 %v388, %v387
        %v417 = vpack.c.b16 %v390, %v389
        %v418 = vpack.c.b16 %v392, %v391
        %v419 = vpack.c.b16 %v394, %v393
        %v420 = vpack.c.b16 %v396, %v395
        %v421 = vpack.c.b16 %v398, %v397
        %v422 = vpack.c.b16 %v400, %v399
        %v423 = vpack.c.b16 %v402, %v401
        %v424 = vpack.c.b16 %v404, %v403
        %v425 = vpack.c.b16 %v406, %v405
        %v426 = vpack.c.b16 %v408, %v407
        %v427 = vpack.c.b16 %v410, %v409
        %v428 = vpack.c.b16 %v412, %v411
        %v433 = vunpack.c.l.b16 %v345
        %v434 = vunpack.c.h.b16 %v345
        %v435 = vunpack.c.l.b16 %v346
        %v436 = vunpack.c.h.b16 %v346
        %v437 = vunpack.c.l.b16 %v347
        %v438 = vunpack.c.h.b16 %v347
        %v439 = vunpack.c.l.b16 %v348
        %v440 = vunpack.c.h.b16 %v348
        %v441 = vpack.c.b16 %v435, %v433
        %v442 = vpack.c.b16 %v436, %v434
        %v443 = vpack.c.b16 %v439, %v437
        %v444 = vpack.c.b16 %v440, %v438
        %vm449 = vcmask 261120
        %v451 = vsel %vm449, %v413, 0
        %v454 = vsel %vm449, %v414, 0
        %v457 = vsel %vm449, %v415, 0
        %v460 = vsel %vm449, %v416, 0
        %v463 = vsel %vm449, %v417, 0
        %v466 = vsel %vm449, %v418, 0
        %v469 = vsel %vm449, %v419, 0
        %v472 = vsel %vm449, %v420, 0
        %v475 = vsel %vm449, %v421, 0
        %v478 = vsel %vm449, %v422, 0
        %v481 = vsel %vm449, %v423, 0
        %v484 = vsel %vm449, %v424, 0
        %v487 = vsel %vm449, %v425, 0
        %v490 = vsel %vm449, %v426, 0
        %v493 = vsel %vm449, %v427, 0
        %v496 = vsel %vm449, %v428, 0
        %498 = vmatprep.subr.bf16.mxu0 0
        %499 = vmatpush1.bf16.msra.mxu0 0
        %500 = vmatprep.subr.bf16.mxu0 0
        %501 = vmatpush1.bf16.msra.mxu0 0
        %502 = vmatprep.subr.bf16.mxu0 0
        %503 = vmatpush1.bf16.msra.mxu0 0
        %504 = vmatprep.subr.bf16.mxu0 0
        %505 = vmatpush1.bf16.msra.mxu0 0
        %506 = vmatprep.subr.bf16.mxu0 0
        %507 = vmatpush1.bf16.msra.mxu0 0
        %508 = vmatprep.subr.bf16.mxu0 0
        %509 = vmatpush1.bf16.msra.mxu0 0
        %510 = vmatprep.subr.bf16.mxu0 %v444
        %511 = vmatpush1.bf16.msra.mxu0 %v443
        %512 = vmatprep.subr.bf16.mxu0 %v442
        %513 = vmatpush1.bf16.msra.mxu0 %v441
        %514 = vmatprep.subr.bf16.mxu0 0
        %515 = vmatpush2.bf16.msra.mxu0 0
        %516 = vmatprep.subr.bf16.mxu0 0
        %517 = vmatpush2.bf16.msra.mxu0 0
        %518 = vmatprep.subr.bf16.mxu0 0
        %519 = vmatpush2.bf16.msra.mxu0 0
        %520 = vmatprep.subr.bf16.mxu0 0
        %521 = vmatpush2.bf16.msra.mxu0 0
        %522 = vmatprep.subr.bf16.mxu0 0
        %523 = vmatpush2.bf16.msra.mxu0 0
        %524 = vmatprep.subr.bf16.mxu0 0
        %525 = vmatpush2.bf16.msra.mxu0 0
        %526 = vmatprep.subr.bf16.mxu0 0
        %527 = vmatpush2.bf16.msra.mxu0 0
        %528 = vmatprep.subr.bf16.mxu0 0
        %529 = vmatpush2.bf16.msra.mxu0 0
        %530 = vmatprep.mubr.bf16.mxu0 0
        %531 = vmatmul.mubr.bf16.gmra.mxu0 %v451
        %v532 = vpop.f32.mrf.mxu0
        %v533 = vadd.f32 0.0, %v532
        %v534 = vpop.f32.mrf.mxu0
        %v535 = vadd.f32 0.0, %v534
        %v536 = vpop.f32.mrf.mxu0
        %v537 = vadd.f32 0.0, %v536
        %v538 = vpop.f32.mrf.mxu0
        %v539 = vadd.f32 0.0, %v538
        %540 = vmatprep.mubr.bf16.mxu0 0
        %541 = vmatmul.mubr.bf16.gmra.mxu0 %v454
        %v542 = vpop.f32.mrf.mxu0
        %v543 = vadd.f32 0.0, %v542
        %v544 = vpop.f32.mrf.mxu0
        %v545 = vadd.f32 0.0, %v544
        %v546 = vpop.f32.mrf.mxu0
        %v547 = vadd.f32 0.0, %v546
        %v548 = vpop.f32.mrf.mxu0
        %v549 = vadd.f32 0.0, %v548
        %550 = vmatprep.mubr.bf16.mxu0 0
        %551 = vmatmul.mubr.bf16.gmra.mxu0 %v457
        %v552 = vpop.f32.mrf.mxu0
        %v553 = vadd.f32 0.0, %v552
        %v554 = vpop.f32.mrf.mxu0
        %v555 = vadd.f32 0.0, %v554
        %v556 = vpop.f32.mrf.mxu0
        %v557 = vadd.f32 0.0, %v556
        %v558 = vpop.f32.mrf.mxu0
        %v559 = vadd.f32 0.0, %v558
        %560 = vmatprep.mubr.bf16.mxu0 0
        %561 = vmatmul.mubr.bf16.gmra.mxu0 %v460
        %v562 = vpop.f32.mrf.mxu0
        %v563 = vadd.f32 0.0, %v562
        %v564 = vpop.f32.mrf.mxu0
        %v565 = vadd.f32 0.0, %v564
        %v566 = vpop.f32.mrf.mxu0
        %v567 = vadd.f32 0.0, %v566
        %v568 = vpop.f32.mrf.mxu0
        %v569 = vadd.f32 0.0, %v568
        %570 = vmatprep.mubr.bf16.mxu0 0
        %571 = vmatmul.mubr.bf16.gmra.mxu0 %v463
        %v572 = vpop.f32.mrf.mxu0
        %v573 = vadd.f32 0.0, %v572
        %v574 = vpop.f32.mrf.mxu0
        %v575 = vadd.f32 0.0, %v574
        %v576 = vpop.f32.mrf.mxu0
        %v577 = vadd.f32 0.0, %v576
        %v578 = vpop.f32.mrf.mxu0
        %v579 = vadd.f32 0.0, %v578
        %580 = vmatprep.mubr.bf16.mxu0 0
        %581 = vmatmul.mubr.bf16.gmra.mxu0 %v466
        %v582 = vpop.f32.mrf.mxu0
        %v583 = vadd.f32 0.0, %v582
        %v584 = vpop.f32.mrf.mxu0
        %v585 = vadd.f32 0.0, %v584
        %v586 = vpop.f32.mrf.mxu0
        %v587 = vadd.f32 0.0, %v586
        %v588 = vpop.f32.mrf.mxu0
        %v589 = vadd.f32 0.0, %v588
        %590 = vmatprep.mubr.bf16.mxu0 0
        %591 = vmatmul.mubr.bf16.gmra.mxu0 %v469
        %v592 = vpop.f32.mrf.mxu0
        %v593 = vadd.f32 0.0, %v592
        %v594 = vpop.f32.mrf.mxu0
        %v595 = vadd.f32 0.0, %v594
        %v596 = vpop.f32.mrf.mxu0
        %v597 = vadd.f32 0.0, %v596
        %v598 = vpop.f32.mrf.mxu0
        %v599 = vadd.f32 0.0, %v598
        %600 = vmatprep.mubr.bf16.mxu0 0
        %601 = vmatmul.mubr.bf16.gmra.mxu0 %v472
        %v602 = vpop.f32.mrf.mxu0
        %v603 = vadd.f32 0.0, %v602
        %v604 = vpop.f32.mrf.mxu0
        %v605 = vadd.f32 0.0, %v604
        %v606 = vpop.f32.mrf.mxu0
        %v607 = vadd.f32 0.0, %v606
        %v608 = vpop.f32.mrf.mxu0
        %v609 = vadd.f32 0.0, %v608
        %610 = vmatprep.mubr.bf16.mxu0 0
        %611 = vmatmul.mubr.bf16.gmra.mxu0 %v475
        %v612 = vpop.f32.mrf.mxu0
        %v613 = vadd.f32 0.0, %v612
        %v614 = vpop.f32.mrf.mxu0
        %v615 = vadd.f32 0.0, %v614
        %v616 = vpop.f32.mrf.mxu0
        %v617 = vadd.f32 0.0, %v616
        %v618 = vpop.f32.mrf.mxu0
        %v619 = vadd.f32 0.0, %v618
        %620 = vmatprep.mubr.bf16.mxu0 0
        %621 = vmatmul.mubr.bf16.gmra.mxu0 %v478
        %v622 = vpop.f32.mrf.mxu0
        %v623 = vadd.f32 0.0, %v622
        %v624 = vpop.f32.mrf.mxu0
        %v625 = vadd.f32 0.0, %v624
        %v626 = vpop.f32.mrf.mxu0
        %v627 = vadd.f32 0.0, %v626
        %v628 = vpop.f32.mrf.mxu0
        %v629 = vadd.f32 0.0, %v628
        %630 = vmatprep.mubr.bf16.mxu0 0
        %631 = vmatmul.mubr.bf16.gmra.mxu0 %v481
        %v632 = vpop.f32.mrf.mxu0
        %v633 = vadd.f32 0.0, %v632
        %v634 = vpop.f32.mrf.mxu0
        %v635 = vadd.f32 0.0, %v634
        %v636 = vpop.f32.mrf.mxu0
        %v637 = vadd.f32 0.0, %v636
        %v638 = vpop.f32.mrf.mxu0
        %v639 = vadd.f32 0.0, %v638
        %640 = vmatprep.mubr.bf16.mxu0 0
        %641 = vmatmul.mubr.bf16.gmra.mxu0 %v484
        %v642 = vpop.f32.mrf.mxu0
        %v643 = vadd.f32 0.0, %v642
        %v644 = vpop.f32.mrf.mxu0
        %v645 = vadd.f32 0.0, %v644
        %v646 = vpop.f32.mrf.mxu0
        %v647 = vadd.f32 0.0, %v646
        %v648 = vpop.f32.mrf.mxu0
        %v649 = vadd.f32 0.0, %v648
        %650 = vmatprep.mubr.bf16.mxu0 0
        %651 = vmatmul.mubr.bf16.gmra.mxu0 %v487
        %v652 = vpop.f32.mrf.mxu0
        %v653 = vadd.f32 0.0, %v652
        %v654 = vpop.f32.mrf.mxu0
        %v655 = vadd.f32 0.0, %v654
        %v656 = vpop.f32.mrf.mxu0
        %v657 = vadd.f32 0.0, %v656
        %v658 = vpop.f32.mrf.mxu0
        %v659 = vadd.f32 0.0, %v658
        %660 = vmatprep.mubr.bf16.mxu0 0
        %661 = vmatmul.mubr.bf16.gmra.mxu0 %v490
        %v662 = vpop.f32.mrf.mxu0
        %v663 = vadd.f32 0.0, %v662
        %v664 = vpop.f32.mrf.mxu0
        %v665 = vadd.f32 0.0, %v664
        %v666 = vpop.f32.mrf.mxu0
        %v667 = vadd.f32 0.0, %v666
        %v668 = vpop.f32.mrf.mxu0
        %v669 = vadd.f32 0.0, %v668
        %670 = vmatprep.mubr.bf16.mxu0 0
        %671 = vmatmul.mubr.bf16.gmra.mxu0 %v493
        %v672 = vpop.f32.mrf.mxu0
        %v673 = vadd.f32 0.0, %v672
        %v674 = vpop.f32.mrf.mxu0
        %v675 = vadd.f32 0.0, %v674
        %v676 = vpop.f32.mrf.mxu0
        %v677 = vadd.f32 0.0, %v676
        %v678 = vpop.f32.mrf.mxu0
        %v679 = vadd.f32 0.0, %v678
        %680 = vmatprep.mubr.bf16.mxu0 0
        %681 = vmatmul.mubr.bf16.gmra.mxu0 %v496
        %v682 = vpop.f32.mrf.mxu0
        %v683 = vadd.f32 0.0, %v682
        %v684 = vpop.f32.mrf.mxu0
        %v685 = vadd.f32 0.0, %v684
        %v686 = vpop.f32.mrf.mxu0
        %v687 = vadd.f32 0.0, %v686
        %v688 = vpop.f32.mrf.mxu0
        %v689 = vadd.f32 0.0, %v688
        %690 = vdwg.mxu0
        %vm691 = vcmask 31744
        %v692 = vsel %vm691, %v535, -inf
        %v693 = vsel %vm691, %v545, -inf
        %v694 = vsel %vm691, %v555, -inf
        %v695 = vmax.f32 %v692, %v694
        %v696 = vsel %vm691, %v565, -inf
        %v697 = vmax.f32 %v693, %v696
        %v698 = vsel %vm691, %v575, -inf
        %v699 = vmax.f32 %v695, %v698
        %v700 = vsel %vm691, %v585, -inf
        %v701 = vmax.f32 %v697, %v700
        %v702 = vsel %vm691, %v595, -inf
        %v703 = vmax.f32 %v699, %v702
        %v704 = vsel %vm691, %v605, -inf
        %v705 = vmax.f32 %v701, %v704
        %v706 = vsel %vm691, %v615, -inf
        %v707 = vmax.f32 %v703, %v706
        %v708 = vsel %vm691, %v625, -inf
        %v709 = vmax.f32 %v705, %v708
        %v710 = vsel %vm691, %v635, -inf
        %v711 = vmax.f32 %v707, %v710
        %v712 = vsel %vm691, %v645, -inf
        %v713 = vmax.f32 %v709, %v712
        %v714 = vsel %vm691, %v655, -inf
        %v715 = vmax.f32 %v711, %v714
        %v716 = vsel %vm691, %v665, -inf
        %v717 = vmax.f32 %v713, %v716
        %v718 = vsel %vm691, %v675, -inf
        %v719 = vmax.f32 %v715, %v718
        %v720 = vsel %vm691, %v685, -inf
        %v721 = vmax.f32 %v717, %v720
        %v722 = vmax.f32 %v719, %v721
        %v723 = vsel %vm691, %v539, -inf
        %v724 = vsel %vm691, %v549, -inf
        %v725 = vsel %vm691, %v559, -inf
        %v726 = vmax.f32 %v723, %v725
        %v727 = vsel %vm691, %v569, -inf
        %v728 = vmax.f32 %v724, %v727
        %v729 = vsel %vm691, %v579, -inf
        %v730 = vmax.f32 %v726, %v729
        %v731 = vsel %vm691, %v589, -inf
        %v732 = vmax.f32 %v728, %v731
        %v733 = vsel %vm691, %v599, -inf
        %v734 = vmax.f32 %v730, %v733
        %v735 = vsel %vm691, %v609, -inf
        %v736 = vmax.f32 %v732, %v735
        %v737 = vsel %vm691, %v619, -inf
        %v738 = vmax.f32 %v734, %v737
        %v739 = vsel %vm691, %v629, -inf
        %v740 = vmax.f32 %v736, %v739
        %v741 = vsel %vm691, %v639, -inf
        %v742 = vmax.f32 %v738, %v741
        %v743 = vsel %vm691, %v649, -inf
        %v744 = vmax.f32 %v740, %v743
        %v745 = vsel %vm691, %v659, -inf
        %v746 = vmax.f32 %v742, %v745
        %v747 = vsel %vm691, %v669, -inf
        %v748 = vmax.f32 %v744, %v747
        %v749 = vsel %vm691, %v679, -inf
        %v750 = vmax.f32 %v746, %v749
        %v751 = vsel %vm691, %v689, -inf
        %v752 = vmax.f32 %v748, %v751
        %v753 = vmax.f32 %v750, %v752
        %v754 = vsub.f32 %v535, %v722
        %v755 = vsub.f32 %v539, %v753
        %v756 = vsub.f32 %v545, %v722
        %v757 = vsub.f32 %v549, %v753
        %v758 = vsub.f32 %v555, %v722
        %v759 = vsub.f32 %v559, %v753
        %v760 = vsub.f32 %v565, %v722
        %v761 = vsub.f32 %v569, %v753
        %v762 = vsub.f32 %v575, %v722
        %v763 = vsub.f32 %v579, %v753
        %v764 = vsub.f32 %v585, %v722
        %v765 = vsub.f32 %v589, %v753
        %v766 = vsub.f32 %v595, %v722
        %v767 = vsub.f32 %v599, %v753
        %v768 = vsub.f32 %v605, %v722
        %v769 = vsub.f32 %v609, %v753
        %v770 = vsub.f32 %v615, %v722
        %v771 = vsub.f32 %v619, %v753
        %v772 = vsub.f32 %v625, %v722
        %v773 = vsub.f32 %v629, %v753
        %v774 = vsub.f32 %v635, %v722
        %v775 = vsub.f32 %v639, %v753
        %v776 = vsub.f32 %v645, %v722
        %v777 = vsub.f32 %v649, %v753
        %v778 = vsub.f32 %v655, %v722
        %v779 = vsub.f32 %v659, %v753
        %v780 = vsub.f32 %v665, %v722
        %v781 = vsub.f32 %v669, %v753
        %v782 = vsub.f32 %v675, %v722
        %v783 = vsub.f32 %v679, %v753
        %v784 = vsub.f32 %v685, %v722
        %v785 = vsub.f32 %v689, %v753
        %v786 = vmul.f32 %v754, 1.442695
        %v787 = vpow.pop %v786
        %v788 = vmul.f32 %v755, 1.442695
        %v789 = vpow.pop %v788
        %v790 = vmul.f32 %v756, 1.442695
        %v791 = vpow.pop %v790
        %v792 = vmul.f32 %v757, 1.442695
        %v793 = vpow.pop %v792
        %v794 = vmul.f32 %v758, 1.442695
        %v795 = vpow.pop %v794
        %v796 = vmul.f32 %v759, 1.442695
        %v797 = vpow.pop %v796
        %v798 = vmul.f32 %v760, 1.442695
        %v799 = vpow.pop %v798
        %v800 = vmul.f32 %v761, 1.442695
        %v801 = vpow.pop %v800
        %v802 = vmul.f32 %v762, 1.442695
        %v803 = vpow.pop %v802
        %v804 = vmul.f32 %v763, 1.442695
        %v805 = vpow.pop %v804
        %v806 = vmul.f32 %v764, 1.442695
        %v807 = vpow.pop %v806
        %v808 = vmul.f32 %v765, 1.442695
        %v809 = vpow.pop %v808
        %v810 = vmul.f32 %v766, 1.442695
        %v811 = vpow.pop %v810
        %v812 = vmul.f32 %v767, 1.442695
        %v813 = vpow.pop %v812
        %v814 = vmul.f32 %v768, 1.442695
        %v815 = vpow.pop %v814
        %v816 = vmul.f32 %v769, 1.442695
        %v817 = vpow.pop %v816
        %v818 = vmul.f32 %v770, 1.442695
        %v819 = vpow.pop %v818
        %v820 = vmul.f32 %v771, 1.442695
        %v821 = vpow.pop %v820
        %v822 = vmul.f32 %v772, 1.442695
        %v823 = vpow.pop %v822
        %v824 = vmul.f32 %v773, 1.442695
        %v825 = vpow.pop %v824
        %v826 = vmul.f32 %v774, 1.442695
        %v827 = vpow.pop %v826
        %v828 = vmul.f32 %v775, 1.442695
        %v829 = vpow.pop %v828
        %v830 = vmul.f32 %v776, 1.442695
        %v831 = vpow.pop %v830
        %v832 = vmul.f32 %v777, 1.442695
        %v833 = vpow.pop %v832
        %v834 = vmul.f32 %v778, 1.442695
        %v835 = vpow.pop %v834
        %v836 = vmul.f32 %v779, 1.442695
        %v837 = vpow.pop %v836
        %v838 = vmul.f32 %v780, 1.442695
        %v839 = vpow.pop %v838
        %v840 = vmul.f32 %v781, 1.442695
        %v841 = vpow.pop %v840
        %v842 = vmul.f32 %v782, 1.442695
        %v843 = vpow.pop %v842
        %v844 = vmul.f32 %v783, 1.442695
        %v845 = vpow.pop %v844
        %v846 = vmul.f32 %v784, 1.442695
        %v847 = vpow.pop %v846
        %v848 = vmul.f32 %v785, 1.442695
        %v849 = vpow.pop %v848
        %v850 = vsel %vm691, %v787, 0.0
        %v851 = vsel %vm691, %v791, 0.0
        %v852 = vadd.f32 %v850, %v851
        %v853 = vsel %vm691, %v795, 0.0
        %v854 = vadd.f32 %v852, %v853
        %v855 = vsel %vm691, %v799, 0.0
        %v856 = vadd.f32 %v854, %v855
        %v857 = vsel %vm691, %v803, 0.0
        %v858 = vadd.f32 %v856, %v857
        %v859 = vsel %vm691, %v807, 0.0
        %v860 = vadd.f32 %v858, %v859
        %v861 = vsel %vm691, %v811, 0.0
        %v862 = vadd.f32 %v860, %v861
        %v863 = vsel %vm691, %v815, 0.0
        %v864 = vadd.f32 %v862, %v863
        %v865 = vsel %vm691, %v819, 0.0
        %v866 = vadd.f32 %v864, %v865
        %v867 = vsel %vm691, %v823, 0.0
        %v868 = vadd.f32 %v866, %v867
        %v869 = vsel %vm691, %v827, 0.0
        %v870 = vadd.f32 %v868, %v869
        %v871 = vsel %vm691, %v831, 0.0
        %v872 = vadd.f32 %v870, %v871
        %v873 = vsel %vm691, %v835, 0.0
        %v874 = vadd.f32 %v872, %v873
        %v875 = vsel %vm691, %v839, 0.0
        %v876 = vadd.f32 %v874, %v875
        %v877 = vsel %vm691, %v843, 0.0
        %v878 = vadd.f32 %v876, %v877
        %v879 = vsel %vm691, %v847, 0.0
        %v880 = vadd.f32 %v878, %v879
        %v881 = vsel %vm691, %v789, 0.0
        %v882 = vsel %vm691, %v793, 0.0
        %v883 = vadd.f32 %v881, %v882
        %v884 = vsel %vm691, %v797, 0.0
        %v885 = vadd.f32 %v883, %v884
        %v886 = vsel %vm691, %v801, 0.0
        %v887 = vadd.f32 %v885, %v886
        %v888 = vsel %vm691, %v805, 0.0
        %v889 = vadd.f32 %v887, %v888
        %v890 = vsel %vm691, %v809, 0.0
        %v891 = vadd.f32 %v889, %v890
        %v892 = vsel %vm691, %v813, 0.0
        %v893 = vadd.f32 %v891, %v892
        %v894 = vsel %vm691, %v817, 0.0
        %v895 = vadd.f32 %v893, %v894
        %v896 = vsel %vm691, %v821, 0.0
        %v897 = vadd.f32 %v895, %v896
        %v898 = vsel %vm691, %v825, 0.0
        %v899 = vadd.f32 %v897, %v898
        %v900 = vsel %vm691, %v829, 0.0
        %v901 = vadd.f32 %v899, %v900
        %v902 = vsel %vm691, %v833, 0.0
        %v903 = vadd.f32 %v901, %v902
        %v904 = vsel %vm691, %v837, 0.0
        %v905 = vadd.f32 %v903, %v904
        %v906 = vsel %vm691, %v841, 0.0
        %v907 = vadd.f32 %v905, %v906
        %v908 = vsel %vm691, %v845, 0.0
        %v909 = vadd.f32 %v907, %v908
        %v910 = vsel %vm691, %v849, 0.0
        %v911 = vadd.f32 %v909, %v910
        %v912 = vld [vmem:[#allocation7] sm:$0xf]
        %v914 = vsel %vm691, %v787, 0
        %v917 = vsel %vm691, %v789, 0
        %v920 = vsel %vm691, %v791, 0
        %v923 = vsel %vm691, %v793, 0
        %v926 = vsel %vm691, %v795, 0
        %v929 = vsel %vm691, %v797, 0
        %v932 = vsel %vm691, %v799, 0
        %v935 = vsel %vm691, %v801, 0
        %v938 = vsel %vm691, %v803, 0
        %v941 = vsel %vm691, %v805, 0
        %v944 = vsel %vm691, %v807, 0
        %v947 = vsel %vm691, %v809, 0
        %v950 = vsel %vm691, %v811, 0
        %v953 = vsel %vm691, %v813, 0
        %v956 = vsel %vm691, %v815, 0
        %v959 = vsel %vm691, %v817, 0
        %v962 = vsel %vm691, %v819, 0
        %v965 = vsel %vm691, %v821, 0
        %v968 = vsel %vm691, %v823, 0
        %v971 = vsel %vm691, %v825, 0
        %v974 = vsel %vm691, %v827, 0
        %v977 = vsel %vm691, %v829, 0
        %v980 = vsel %vm691, %v831, 0
        %v983 = vsel %vm691, %v833, 0
        %v986 = vsel %vm691, %v835, 0
        %v989 = vsel %vm691, %v837, 0
        %v992 = vsel %vm691, %v839, 0
        %v995 = vsel %vm691, %v841, 0
        %v998 = vsel %vm691, %v843, 0
        %v1001 = vsel %vm691, %v845, 0
        %v1004 = vsel %vm691, %v847, 0
        %v1007 = vsel %vm691, %v849, 0
        %vm1009 = vcmask 1043456
        %v1011 = vsel %vm1009, %v912, 0
        %1013 = vmatprep.subr.mxu0 0.0
        %1014 = vmatpush1.msra.mxu0 0.0
        %1015 = vmatprep.subr.mxu0 0.0
        %1016 = vmatpush1.msra.mxu0 0.0
        %1017 = vmatprep.subr.mxu0 0.0
        %1018 = vmatpush1.msra.mxu0 0.0
        %1019 = vmatprep.subr.mxu0 0.0
        %1020 = vmatpush1.msra.mxu0 0.0
        %1021 = vmatprep.subr.mxu0 0.0
        %1022 = vmatpush1.msra.mxu0 0.0
        %1023 = vmatprep.subr.mxu0 0.0
        %1024 = vmatpush1.msra.mxu0 0.0
        %1025 = vmatprep.subr.mxu0 0.0
        %1026 = vmatpush1.msra.mxu0 0.0
        %1027 = vmatprep.subr.mxu0 0.0
        %1028 = vmatpush1.msra.mxu0 0.0
        %1029 = vmatprep.subr.mxu0 0.0
        %1030 = vmatpush1.msra.mxu0 0.0
        %1031 = vmatprep.subr.mxu0 0.0
        %1032 = vmatpush1.msra.mxu0 0.0
        %1033 = vmatprep.subr.mxu0 0.0
        %1034 = vmatpush1.msra.mxu0 0.0
        %1035 = vmatprep.subr.mxu0 0.0
        %1036 = vmatpush1.msra.mxu0 0.0
        %1037 = vmatprep.subr.mxu0 0.0
        %1038 = vmatpush1.msra.mxu0 0.0
        %1039 = vmatprep.subr.mxu0 0.0
        %1040 = vmatpush1.msra.mxu0 0.0
        %1041 = vmatprep.subr.mxu0 0.0
        %1042 = vmatpush1.msra.mxu0 0.0
        %1043 = vmatprep.subr.mxu0 0.0
        %1044 = vmatpush1.msra.mxu0 %v1011
        %1045 = vmatprep.subr.mxu0 0.0
        %1046 = vmatpush2.msra.mxu0 0.0
        %1047 = vmatprep.subr.mxu0 0.0
        %1048 = vmatpush2.msra.mxu0 0.0
        %1049 = vmatprep.subr.mxu0 0.0
        %1050 = vmatpush2.msra.mxu0 0.0
        %1051 = vmatprep.subr.mxu0 0.0
        %1052 = vmatpush2.msra.mxu0 0.0
        %1053 = vmatprep.subr.mxu0 0.0
        %1054 = vmatpush2.msra.mxu0 0.0
        %1055 = vmatprep.subr.mxu0 0.0
        %1056 = vmatpush2.msra.mxu0 0.0
        %1057 = vmatprep.subr.mxu0 0.0
        %1058 = vmatpush2.msra.mxu0 0.0
        %1059 = vmatprep.subr.mxu0 0.0
        %1060 = vmatpush2.msra.mxu0 0.0
        %1061 = vmatprep.subr.mxu0 0.0
        %1062 = vmatpush2.msra.mxu0 0.0
        %1063 = vmatprep.subr.mxu0 0.0
        %1064 = vmatpush2.msra.mxu0 0.0
        %1065 = vmatprep.subr.mxu0 0.0
        %1066 = vmatpush2.msra.mxu0 0.0
        %1067 = vmatprep.subr.mxu0 0.0
        %1068 = vmatpush2.msra.mxu0 0.0
        %1069 = vmatprep.subr.mxu0 0.0
        %1070 = vmatpush2.msra.mxu0 0.0
        %1071 = vmatprep.subr.mxu0 0.0
        %1072 = vmatpush2.msra.mxu0 0.0
        %1073 = vmatprep.subr.mxu0 0.0
        %1074 = vmatpush2.msra.mxu0 0.0
        %1075 = vmatprep.subr.mxu0 0.0
        %1076 = vmatpush2.msra.mxu0 0.0
        %1077 = vmatprep.mubr.f32.mxu0 0.0
        %1078 = vmatmul.mubr.f32.gmra.mxu0 %v914
        %v1079 = vpop.f32.mrf.mxu0
        %v1080 = vadd.f32 0.0, %v1079
        %v1081 = vpop.f32.mrf.mxu0
        %1082 = vmatprep.mubr.f32.mxu0 0.0
        %1083 = vmatmul.mubr.f32.gmra.mxu0 %v917
        %v1084 = vpop.f32.mrf.mxu0
        %v1085 = vadd.f32 0.0, %v1084
        %v1086 = vpop.f32.mrf.mxu0
        %1087 = vmatprep.mubr.f32.mxu0 0.0
        %1088 = vmatmul.mubr.f32.gmra.mxu0 %v920
        %v1089 = vpop.f32.mrf.mxu0
        %v1090 = vadd.f32 0.0, %v1089
        %v1091 = vpop.f32.mrf.mxu0
        %1092 = vmatprep.mubr.f32.mxu0 0.0
        %1093 = vmatmul.mubr.f32.gmra.mxu0 %v923
        %v1094 = vpop.f32.mrf.mxu0
        %v1095 = vadd.f32 0.0, %v1094
        %v1096 = vpop.f32.mrf.mxu0
        %1097 = vmatprep.mubr.f32.mxu0 0.0
        %1098 = vmatmul.mubr.f32.gmra.mxu0 %v926
        %v1099 = vpop.f32.mrf.mxu0
        %v1100 = vadd.f32 0.0, %v1099
        %v1101 = vpop.f32.mrf.mxu0
        %1102 = vmatprep.mubr.f32.mxu0 0.0
        %1103 = vmatmul.mubr.f32.gmra.mxu0 %v929
        %v1104 = vpop.f32.mrf.mxu0
        %v1105 = vadd.f32 0.0, %v1104
        %v1106 = vpop.f32.mrf.mxu0
        %1107 = vmatprep.mubr.f32.mxu0 0.0
        %1108 = vmatmul.mubr.f32.gmra.mxu0 %v932
        %v1109 = vpop.f32.mrf.mxu0
        %v1110 = vadd.f32 0.0, %v1109
        %v1111 = vpop.f32.mrf.mxu0
        %1112 = vmatprep.mubr.f32.mxu0 0.0
        %1113 = vmatmul.mubr.f32.gmra.mxu0 %v935
        %v1114 = vpop.f32.mrf.mxu0
        %v1115 = vadd.f32 0.0, %v1114
        %v1116 = vpop.f32.mrf.mxu0
        %1117 = vmatprep.mubr.f32.mxu0 0.0
        %1118 = vmatmul.mubr.f32.gmra.mxu0 %v938
        %v1119 = vpop.f32.mrf.mxu0
        %v1120 = vadd.f32 0.0, %v1119
        %v1121 = vpop.f32.mrf.mxu0
        %1122 = vmatprep.mubr.f32.mxu0 0.0
        %1123 = vmatmul.mubr.f32.gmra.mxu0 %v941
        %v1124 = vpop.f32.mrf.mxu0
        %v1125 = vadd.f32 0.0, %v1124
        %v1126 = vpop.f32.mrf.mxu0
        %1127 = vmatprep.mubr.f32.mxu0 0.0
        %1128 = vmatmul.mubr.f32.gmra.mxu0 %v944
        %v1129 = vpop.f32.mrf.mxu0
        %v1130 = vadd.f32 0.0, %v1129
        %v1131 = vpop.f32.mrf.mxu0
        %1132 = vmatprep.mubr.f32.mxu0 0.0
        %1133 = vmatmul.mubr.f32.gmra.mxu0 %v947
        %v1134 = vpop.f32.mrf.mxu0
        %v1135 = vadd.f32 0.0, %v1134
        %v1136 = vpop.f32.mrf.mxu0
        %1137 = vmatprep.mubr.f32.mxu0 0.0
        %1138 = vmatmul.mubr.f32.gmra.mxu0 %v950
        %v1139 = vpop.f32.mrf.mxu0
        %v1140 = vadd.f32 0.0, %v1139
        %v1141 = vpop.f32.mrf.mxu0
        %1142 = vmatprep.mubr.f32.mxu0 0.0
        %1143 = vmatmul.mubr.f32.gmra.mxu0 %v953
        %v1144 = vpop.f32.mrf.mxu0
        %v1145 = vadd.f32 0.0, %v1144
        %v1146 = vpop.f32.mrf.mxu0
        %1147 = vmatprep.mubr.f32.mxu0 0.0
        %1148 = vmatmul.mubr.f32.gmra.mxu0 %v956
        %v1149 = vpop.f32.mrf.mxu0
        %v1150 = vadd.f32 0.0, %v1149
        %v1151 = vpop.f32.mrf.mxu0
        %1152 = vmatprep.mubr.f32.mxu0 0.0
        %1153 = vmatmul.mubr.f32.gmra.mxu0 %v959
        %v1154 = vpop.f32.mrf.mxu0
        %v1155 = vadd.f32 0.0, %v1154
        %v1156 = vpop.f32.mrf.mxu0
        %1157 = vmatprep.mubr.f32.mxu0 0.0
        %1158 = vmatmul.mubr.f32.gmra.mxu0 %v962
        %v1159 = vpop.f32.mrf.mxu0
        %v1160 = vadd.f32 0.0, %v1159
        %v1161 = vpop.f32.mrf.mxu0
        %1162 = vmatprep.mubr.f32.mxu0 0.0
        %1163 = vmatmul.mubr.f32.gmra.mxu0 %v965
        %v1164 = vpop.f32.mrf.mxu0
        %v1165 = vadd.f32 0.0, %v1164
        %v1166 = vpop.f32.mrf.mxu0
        %1167 = vmatprep.mubr.f32.mxu0 0.0
        %1168 = vmatmul.mubr.f32.gmra.mxu0 %v968
        %v1169 = vpop.f32.mrf.mxu0
        %v1170 = vadd.f32 0.0, %v1169
        %v1171 = vpop.f32.mrf.mxu0
        %1172 = vmatprep.mubr.f32.mxu0 0.0
        %1173 = vmatmul.mubr.f32.gmra.mxu0 %v971
        %v1174 = vpop.f32.mrf.mxu0
        %v1175 = vadd.f32 0.0, %v1174
        %v1176 = vpop.f32.mrf.mxu0
        %1177 = vmatprep.mubr.f32.mxu0 0.0
        %1178 = vmatmul.mubr.f32.gmra.mxu0 %v974
        %v1179 = vpop.f32.mrf.mxu0
        %v1180 = vadd.f32 0.0, %v1179
        %v1181 = vpop.f32.mrf.mxu0
        %1182 = vmatprep.mubr.f32.mxu0 0.0
        %1183 = vmatmul.mubr.f32.gmra.mxu0 %v977
        %v1184 = vpop.f32.mrf.mxu0
        %v1185 = vadd.f32 0.0, %v1184
        %v1186 = vpop.f32.mrf.mxu0
        %1187 = vmatprep.mubr.f32.mxu0 0.0
        %1188 = vmatmul.mubr.f32.gmra.mxu0 %v980
        %v1189 = vpop.f32.mrf.mxu0
        %v1190 = vadd.f32 0.0, %v1189
        %v1191 = vpop.f32.mrf.mxu0
        %1192 = vmatprep.mubr.f32.mxu0 0.0
        %1193 = vmatmul.mubr.f32.gmra.mxu0 %v983
        %v1194 = vpop.f32.mrf.mxu0
        %v1195 = vadd.f32 0.0, %v1194
        %v1196 = vpop.f32.mrf.mxu0
        %1197 = vmatprep.mubr.f32.mxu0 0.0
        %1198 = vmatmul.mubr.f32.gmra.mxu0 %v986
        %v1199 = vpop.f32.mrf.mxu0
        %v1200 = vadd.f32 0.0, %v1199
        %v1201 = vpop.f32.mrf.mxu0
        %1202 = vmatprep.mubr.f32.mxu0 0.0
        %1203 = vmatmul.mubr.f32.gmra.mxu0 %v989
        %v1204 = vpop.f32.mrf.mxu0
        %v1205 = vadd.f32 0.0, %v1204
        %v1206 = vpop.f32.mrf.mxu0
        %1207 = vmatprep.mubr.f32.mxu0 0.0
        %1208 = vmatmul.mubr.f32.gmra.mxu0 %v992
        %v1209 = vpop.f32.mrf.mxu0
        %v1210 = vadd.f32 0.0, %v1209
        %v1211 = vpop.f32.mrf.mxu0
        %1212 = vmatprep.mubr.f32.mxu0 0.0
        %1213 = vmatmul.mubr.f32.gmra.mxu0 %v995
        %v1214 = vpop.f32.mrf.mxu0
        %v1215 = vadd.f32 0.0, %v1214
        %v1216 = vpop.f32.mrf.mxu0
        %1217 = vmatprep.mubr.f32.mxu0 0.0
        %1218 = vmatmul.mubr.f32.gmra.mxu0 %v998
        %v1219 = vpop.f32.mrf.mxu0
        %v1220 = vadd.f32 0.0, %v1219
        %v1221 = vpop.f32.mrf.mxu0
        %1222 = vmatprep.mubr.f32.mxu0 0.0
        %1223 = vmatmul.mubr.f32.gmra.mxu0 %v1001
        %v1224 = vpop.f32.mrf.mxu0
        %v1225 = vadd.f32 0.0, %v1224
        %v1226 = vpop.f32.mrf.mxu0
        %1227 = vmatprep.mubr.f32.mxu0 0.0
        %1228 = vmatmul.mubr.f32.gmra.mxu0 %v1004
        %v1229 = vpop.f32.mrf.mxu0
        %v1230 = vadd.f32 0.0, %v1229
        %v1231 = vpop.f32.mrf.mxu0
        %1232 = vmatprep.mubr.f32.mxu0 0.0
        %1233 = vmatmul.mubr.f32.gmra.mxu0 %v1007
        %v1234 = vpop.f32.mrf.mxu0
        %v1235 = vadd.f32 0.0, %v1234
        %v1236 = vpop.f32.mrf.mxu0
        %1237 = vdwg.mxu0
        %v1238 = vmul.f32 %v533, %v1080
        %v1239 = vmul.f32 %v537, %v1085
        %v1240 = vmul.f32 %v543, %v1090
        %v1241 = vmul.f32 %v547, %v1095
        %v1242 = vmul.f32 %v553, %v1100
        %v1243 = vmul.f32 %v557, %v1105
        %v1244 = vmul.f32 %v563, %v1110
        %v1245 = vmul.f32 %v567, %v1115
        %v1246 = vmul.f32 %v573, %v1120
        %v1247 = vmul.f32 %v577, %v1125
        %v1248 = vmul.f32 %v583, %v1130
        %v1249 = vmul.f32 %v587, %v1135
        %v1250 = vmul.f32 %v593, %v1140
        %v1251 = vmul.f32 %v597, %v1145
        %v1252 = vmul.f32 %v603, %v1150
        %v1253 = vmul.f32 %v607, %v1155
        %v1254 = vmul.f32 %v613, %v1160
        %v1255 = vmul.f32 %v617, %v1165
        %v1256 = vmul.f32 %v623, %v1170
        %v1257 = vmul.f32 %v627, %v1175
        %v1258 = vmul.f32 %v633, %v1180
        %v1259 = vmul.f32 %v637, %v1185
        %v1260 = vmul.f32 %v643, %v1190
        %v1261 = vmul.f32 %v647, %v1195
        %v1262 = vmul.f32 %v653, %v1200
        %v1263 = vmul.f32 %v657, %v1205
        %v1264 = vmul.f32 %v663, %v1210
        %v1265 = vmul.f32 %v667, %v1215
        %v1266 = vmul.f32 %v673, %v1220
        %v1267 = vmul.f32 %v677, %v1225
        %v1268 = vmul.f32 %v683, %v1230
        %v1269 = vmul.f32 %v687, %v1235
        %v1270 = vadd.f32 %v1238, %v1240
        %v1271 = vadd.f32 %v1270, %v1242
        %v1272 = vadd.f32 %v1271, %v1244
        %v1273 = vadd.f32 %v1272, %v1246
        %v1274 = vadd.f32 %v1273, %v1248
        %v1275 = vadd.f32 %v1274, %v1250
        %v1276 = vadd.f32 %v1275, %v1252
        %v1277 = vadd.f32 %v1276, %v1254
        %v1278 = vadd.f32 %v1277, %v1256
        %v1279 = vadd.f32 %v1278, %v1258
        %v1280 = vadd.f32 %v1279, %v1260
        %v1281 = vadd.f32 %v1280, %v1262
        %v1282 = vadd.f32 %v1281, %v1264
        %v1283 = vadd.f32 %v1282, %v1266
        %v1284 = vadd.f32 %v1283, %v1268
        %v1285 = vadd.f32 %v1239, %v1241
        %v1286 = vadd.f32 %v1285, %v1243
        %v1287 = vadd.f32 %v1286, %v1245
        %v1288 = vadd.f32 %v1287, %v1247
        %v1289 = vadd.f32 %v1288, %v1249
        %v1290 = vadd.f32 %v1289, %v1251
        %v1291 = vadd.f32 %v1290, %v1253
        %v1292 = vadd.f32 %v1291, %v1255
        %v1293 = vadd.f32 %v1292, %v1257
        %v1294 = vadd.f32 %v1293, %v1259
        %v1295 = vadd.f32 %v1294, %v1261
        %v1296 = vadd.f32 %v1295, %v1263
        %v1297 = vadd.f32 %v1296, %v1265
        %v1298 = vadd.f32 %v1297, %v1267
        %v1299 = vadd.f32 %v1298, %v1269
        %v1301 = vsel %vm691, %v880, 0
        %v1304 = vsel %vm691, %v911, 0
        %1306 = vmatprep.subr.mxu0 0.0
        %1307 = vmatpush1.msra.mxu0 0.0
        %1308 = vmatprep.subr.mxu0 0.0
        %1309 = vmatpush1.msra.mxu0 0.0
        %1310 = vmatprep.subr.mxu0 0.0
        %1311 = vmatpush1.msra.mxu0 0.0
        %1312 = vmatprep.subr.mxu0 0.0
        %1313 = vmatpush1.msra.mxu0 0.0
        %1314 = vmatprep.subr.mxu0 0.0
        %1315 = vmatpush1.msra.mxu0 0.0
        %1316 = vmatprep.subr.mxu0 0.0
        %1317 = vmatpush1.msra.mxu0 0.0
        %1318 = vmatprep.subr.mxu0 0.0
        %1319 = vmatpush1.msra.mxu0 0.0
        %1320 = vmatprep.subr.mxu0 0.0
        %1321 = vmatpush1.msra.mxu0 0.0
        %1322 = vmatprep.subr.mxu0 0.0
        %1323 = vmatpush1.msra.mxu0 0.0
        %1324 = vmatprep.subr.mxu0 0.0
        %1325 = vmatpush1.msra.mxu0 0.0
        %1326 = vmatprep.subr.mxu0 0.0
        %1327 = vmatpush1.msra.mxu0 0.0
        %1328 = vmatprep.subr.mxu0 0.0
        %1329 = vmatpush1.msra.mxu0 0.0
        %1330 = vmatprep.subr.mxu0 0.0
        %1331 = vmatpush1.msra.mxu0 0.0
        %1332 = vmatprep.subr.mxu0 0.0
        %1333 = vmatpush1.msra.mxu0 0.0
        %1334 = vmatprep.subr.mxu0 0.0
        %1335 = vmatpush1.msra.mxu0 0.0
        %1336 = vmatprep.subr.mxu0 0.0
        %1337 = vmatpush1.msra.mxu0 %v1011
        %1338 = vmatprep.subr.mxu0 0.0
        %1339 = vmatpush2.msra.mxu0 0.0
        %1340 = vmatprep.subr.mxu0 0.0
        %1341 = vmatpush2.msra.mxu0 0.0
        %1342 = vmatprep.subr.mxu0 0.0
        %1343 = vmatpush2.msra.mxu0 0.0
        %1344 = vmatprep.subr.mxu0 0.0
        %1345 = vmatpush2.msra.mxu0 0.0
        %1346 = vmatprep.subr.mxu0 0.0
        %1347 = vmatpush2.msra.mxu0 0.0
        %1348 = vmatprep.subr.mxu0 0.0
        %1349 = vmatpush2.msra.mxu0 0.0
        %1350 = vmatprep.subr.mxu0 0.0
        %1351 = vmatpush2.msra.mxu0 0.0
        %1352 = vmatprep.subr.mxu0 0.0
        %1353 = vmatpush2.msra.mxu0 0.0
        %1354 = vmatprep.subr.mxu0 0.0
        %1355 = vmatpush2.msra.mxu0 0.0
        %1356 = vmatprep.subr.mxu0 0.0
        %1357 = vmatpush2.msra.mxu0 0.0
        %1358 = vmatprep.subr.mxu0 0.0
        %1359 = vmatpush2.msra.mxu0 0.0
        %1360 = vmatprep.subr.mxu0 0.0
        %1361 = vmatpush2.msra.mxu0 0.0
        %1362 = vmatprep.subr.mxu0 0.0
        %1363 = vmatpush2.msra.mxu0 0.0
        %1364 = vmatprep.subr.mxu0 0.0
        %1365 = vmatpush2.msra.mxu0 0.0
        %1366 = vmatprep.subr.mxu0 0.0
        %1367 = vmatpush2.msra.mxu0 0.0
        %1368 = vmatprep.subr.mxu0 0.0
        %1369 = vmatpush2.msra.mxu0 0.0
        %1370 = vmatprep.mubr.f32.mxu0 0.0
        %1371 = vmatmul.mubr.f32.gmra.mxu0 %v1301
        %v1372 = vpop.f32.mrf.mxu0
        %v1373 = vadd.f32 0.0, %v1372
        %v1374 = vpop.f32.mrf.mxu0
        %1375 = vmatprep.mubr.f32.mxu0 0.0
        %1376 = vmatmul.mubr.f32.gmra.mxu0 %v1304
        %v1377 = vpop.f32.mrf.mxu0
        %v1378 = vadd.f32 0.0, %v1377
        %v1379 = vpop.f32.mrf.mxu0
        %1380 = vdwg.mxu0
        %v1381 = vrcp.pop %v1373
        %v1382 = vmul.f32 %v1284, %v1381
        %v1383 = vrcp.pop %v1378
        %v1384 = vmul.f32 %v1299, %v1383
        %v1385 = vpack.c.bf16 %v1384, %v1382
        %v1386 = vld [vmem:[#allocation8] sm:$0xf]
        %v1387 = vld [vmem:[#allocation8 + $0x4] sm:$0xf]
        %v1388 = vld [vmem:[#allocation8 + $0x8] sm:$0xf]
        %v1389 = vld [vmem:[#allocation8 + $0xc] sm:$0xf]
        %v1390 = vld [vmem:[#allocation8 + $0x10] sm:$0xf]
        %v1391 = vld [vmem:[#allocation8 + $0x14] sm:$0xf]
        %v1392 = vld [vmem:[#allocation8 + $0x18] sm:$0xf]
        %v1393 = vld [vmem:[#allocation8 + $0x1c] sm:$0xf]
        %v1394 = vld [vmem:[#allocation8 + $0x20] sm:$0xf]
        %v1395 = vld [vmem:[#allocation8 + $0x24] sm:$0xf]
        %v1396 = vld [vmem:[#allocation8 + $0x28] sm:$0xf]
        %v1397 = vld [vmem:[#allocation8 + $0x2c] sm:$0xf]
        %v1398 = vld [vmem:[#allocation8 + $0x30] sm:$0xf]
        %v1399 = vld [vmem:[#allocation8 + $0x34] sm:$0xf]
        %v1400 = vld [vmem:[#allocation8 + $0x38] sm:$0xf]
        %v1401 = vld [vmem:[#allocation8 + $0x3c] sm:$0xf]
        %v1402 = vld [vmem:[%s4] sm:$0x1]
        %v1404 = vlaneseq
        %v1405 = vshrl.u32 %v1404, 7
        %v1406 = vsub.s32 0, %v1405
        %v1407 = vrot.slane %v1402, %v1406
        %v1425 = vunpack.c.l.b16 %v1386
        %v1426 = vunpack.c.l.b16 %v1387
        %v1427 = vunpack.c.l.b16 %v1388
        %v1428 = vunpack.c.l.b16 %v1389
        %v1429 = vunpack.c.l.b16 %v1390
        %v1430 = vunpack.c.l.b16 %v1391
        %v1431 = vunpack.c.l.b16 %v1392
        %v1432 = vunpack.c.l.b16 %v1393
        %v1433 = vunpack.c.l.b16 %v1394
        %v1434 = vunpack.c.l.b16 %v1395
        %v1435 = vunpack.c.l.b16 %v1396
        %v1436 = vunpack.c.l.b16 %v1397
        %v1437 = vunpack.c.l.b16 %v1398
        %v1438 = vunpack.c.l.b16 %v1399
        %v1439 = vunpack.c.l.b16 %v1400
        %v1440 = vunpack.c.l.b16 %v1401
        %v1441 = vpack.c.b16 %v1426, %v1425
        %v1442 = vpack.c.b16 %v1428, %v1427
        %v1443 = vpack.c.b16 %v1430, %v1429
        %v1444 = vpack.c.b16 %v1432, %v1431
        %v1445 = vpack.c.b16 %v1434, %v1433
        %v1446 = vpack.c.b16 %v1436, %v1435
        %v1447 = vpack.c.b16 %v1438, %v1437
        %v1448 = vpack.c.b16 %v1440, %v1439
        %1457 = vmatprep.subr.bf16.mxu0 0
        %1458 = vmatpush1.bf16.msra.mxu0 %v1448
        %1459 = vmatprep.subr.bf16.mxu0 0
        %1460 = vmatpush1.bf16.msra.mxu0 %v1447
        %1461 = vmatprep.subr.bf16.mxu0 0
        %1462 = vmatpush1.bf16.msra.mxu0 %v1446
        %1463 = vmatprep.subr.bf16.mxu0 0
        %1464 = vmatpush1.bf16.msra.mxu0 %v1445
        %1465 = vmatprep.subr.bf16.mxu0 0
        %1466 = vmatpush1.bf16.msra.mxu0 %v1444
        %1467 = vmatprep.subr.bf16.mxu0 0
        %1468 = vmatpush1.bf16.msra.mxu0 %v1443
        %1469 = vmatprep.subr.bf16.mxu0 0
        %1470 = vmatpush1.bf16.msra.mxu0 %v1442
        %1471 = vmatprep.subr.bf16.mxu0 0
        %1472 = vmatpush1.bf16.msra.mxu0 %v1441
        %1473 = vmatprep.subr.bf16.mxu0 0
        %1474 = vmatpush2.bf16.msra.mxu0 0
        %1475 = vmatprep.subr.bf16.mxu0 0
        %1476 = vmatpush2.bf16.msra.mxu0 0
        %1477 = vmatprep.subr.bf16.mxu0 0
        %1478 = vmatpush2.bf16.msra.mxu0 0
        %1479 = vmatprep.subr.bf16.mxu0 0
        %1480 = vmatpush2.bf16.msra.mxu0 0
        %1481 = vmatprep.subr.bf16.mxu0 0
        %1482 = vmatpush2.bf16.msra.mxu0 0
        %1483 = vmatprep.subr.bf16.mxu0 0
        %1484 = vmatpush2.bf16.msra.mxu0 0
        %1485 = vmatprep.subr.bf16.mxu0 0
        %1486 = vmatpush2.bf16.msra.mxu0 0
        %1487 = vmatprep.subr.bf16.mxu0 0
        %1488 = vmatpush2.bf16.msra.mxu0 0
        %1489 = vmatprep.mubr.bf16.mxu0 0
        %1490 = vmatmul.mubr.bf16.gmra.mxu0 %v1385
        %v1491 = vpop.f32.mrf.mxu0
        %v1492 = vadd.f32 %v1407, %v1491
        %v1493 = vpop.f32.mrf.mxu0
        %v1494 = vpop.f32.mrf.mxu0
        %v1495 = vadd.f32 %v1407, %v1494
        %v1496 = vpop.f32.mrf.mxu0
        %1497 = vdwg.mxu0
        %1498 = vst [vmem:[%s309] sm:$0xff] %v1492
        %1499 = vst [vmem:[%s309 + $0x8] sm:$0xff] %v1495
        %s1500 = sand.u32 %s142, 1
        %s1501 = scalar_lea.sflag [#allocation4], %s1500
        %s1502 = sand.u32 %s142, 1
        %s1503 = smul.addr %s1502, 16
        %s1504 = scalar_lea.vmem [#allocation10], %s1503
        // Predicated region
        $region57: #{tpu_custom_call.1} parent=39 // pred_check
          %p1505 = pneg %p152
        $region58: #{tpu_custom_call.1} parent=39 // pred_check_branch
          %1507 = sbr.rel (%p1505) target = $region60
        $region59: #{tpu_custom_call.1} parent=39 // pred_region
          %s1508 = smul.u32 2, %s24
          %s1510 = ssub.s32 256, 256
          %1511 = vsyncadd %s1501, %s1510
          %s1512 = smul.addr %s1508, 128
          %s1513 = scalar_lea.hbm %s5, %s1512
          %s1514 = sshll.u32 %s1504, 4
          %s1515 = int_to_ptr.vmem [resolvable:$true] %s1514
          %1520 = dma.vmem_to_hbm [thread:$0]  %s1515, 256, %s1513, %s1501, 128, 128, 8
        $region60: #{tpu_custom_call.1} parent=39 // pred_fallthru
          _
      $region40: #{tpu_custom_call.1} parent=5 // pred_fallthru
        _
      %p1521 = scmp.le.s32.totalorder 2, %s19
      // Predicated region
      $region61: #{tpu_custom_call.1} parent=5 // pred_check
        %p1522 = pneg %p1521
      $region62: #{tpu_custom_call.1} parent=5 // pred_check_branch
        %1524 = sbr.rel (%p1522) target = $region64
      $region63: #{tpu_custom_call.1} parent=5 // pred_region
        %s1525 = ssub.s32 %s19, 2
        // Predicated region
        $region65: #{tpu_custom_call.1} parent=63 // pred_check
          %p1526 = pneg %p158
        $region66: #{tpu_custom_call.1} parent=63 // pred_check_branch
          %1528 = sbr.rel (%p1526) target = $region68
        $region67: #{tpu_custom_call.1} parent=63 // pred_region
          %s1529 = sand.u32 %s143, 1
          %s1530 = scalar_lea.sflag [#allocation4], %s1529
          %s1531 = sand.u32 %s143, 1
          %s1532 = smul.addr %s1531, 16
          %s1533 = scalar_lea.vmem [#allocation10], %s1532
          %1534 = dma.done %s1530, 256
        $region68: #{tpu_custom_call.1} parent=63 // pred_fallthru
          _
      $region64: #{tpu_custom_call.1} parent=5 // pred_fallthru
        _
    $region6: #{tpu_custom_call.1} parent=1 // loop_footer
      %s23 = sadd.s32 1, %s19
    $region7: #{tpu_custom_call.1} parent=1 // loop_footer_branch
      %18 = sbr.rel target = $region3
    $region8: #{tpu_custom_call.1} parent=1 // loop_exit
      _
    %1535 = vsyncpa [#allocation3], 1
    %s1536 = scalar_lea.sflag [#allocation3], 1
    %1537 = vsyncpa %s1536, 1
    %1538 = vsyncpa [#allocation6], 1
    %1539 = vsyncpa [#allocation9], 1
    %1540 = vsyncpa [#allocation4], 1
    %s1541 = scalar_lea.sflag [#allocation4], 1
    %1542 = vsyncpa %s1541, 1

// kernel: tpu_custom_call.1
$region0: #{tpu_custom_call.1}
  #allocation0 [shape = 'u32[]', space=smem, size = 0x4, offset = 0x4, fixed_abs, tag = 'smem constant byte address 0x4 - core index']
  #allocation1 [shape = 'u32[144,128]{1,0:T(1,128)}', space=vmem, size = 0x12000, scoped, tag = 'internal scratch']
  #allocation11 [shape = 's32[]', space=sflag, size = 0x4, offset = 0, fixed_abs, tag = 'sflag constant byte address 0x0 - dummy sync flag']
  %s0 = inlined_call_operand.hbm [shape: bf16[16,32,32], index: 0, kind: input, shape index: {}]
  %s1 = inlined_call_operand.hbm [shape: bf16[32,132], index: 1, kind: input, shape index: {}]
  %s2 = inlined_call_operand.hbm [shape: f32[4,128], index: 2, kind: input, shape index: {}]
  %s3 = inlined_call_operand.hbm [shape: bf16[128,128], index: 3, kind: input, shape index: {}]
  %s4 = inlined_call_operand.vmem [shape: f32[1,128], index: 4, kind: input, shape index: {}]
  %s5 = inlined_call_operand.hbm [shape: f32[32,128], index: 5, kind: output, shape index: {}]
  %s6 = sld [smem:[#allocation0]]
  $region69: #{tpu_custom_call.1} parent=0
    _
  %s8 = ssub.s32 1, %s6
  %s9 = scalar_select 0, %s8, %s6
  $region1: #{tpu_custom_call.1} parent=0
    #allocation2 [shape = 'u8[131072]{0}', space=vmem, size = 0x20000, scoped, tag = 'input window, operand 0']
    #allocation3 [shape = 's32[2]{0}', space=sflag, size = 0x8, scoped, tag = 'scoped memory for tpu_custom_call.1']
    #allocation4 [shape = 's32[2]{0}', space=sflag, size = 0x8, scoped, tag = 'scoped memory for tpu_custom_call.1']
    #allocation5 [shape = 'u8[16384]{0}', space=vmem, size = 0x4000, scoped, tag = 'input window, operand 1, single buffered']
    #allocation6 [shape = 's32[1]{0}', space=sflag, size = 0x4, scoped, tag = 'scoped memory for tpu_custom_call.1']
    #allocation7 [shape = 'u8[2048]{0}', space=vmem, size = 0x800, scoped, tag = 'input window, operand 2, single buffered']
    #allocation8 [shape = 'u8[32768]{0}', space=vmem, size = 0x8000, scoped, tag = 'input window, operand 3, single buffered']
    #allocation9 [shape = 's32[1]{0}', space=sflag, size = 0x4, scoped, tag = 'scoped memory for tpu_custom_call.1']
    #allocation10 [shape = 'u8[16384]{0}', space=vmem, size = 0x4000, scoped, tag = 'output window, operand 0']
    %10 = vsyncpa [#allocation3], 0
    %s11 = scalar_lea.sflag [#allocation3], 1
    %12 = vsyncpa %s11, 0
    %13 = vsyncpa [#allocation6], 0
    %14 = vsyncpa [#allocation9], 0
    %15 = vsyncpa [#allocation4], 0
    %s16 = scalar_lea.sflag [#allocation4], 1
    %17 = vsyncpa %s16, 0
    loop: start=0, step=1, limit=4
    $region2: #{tpu_custom_call.1} parent=1 // loop_pre_header
      _
    $region3: #{tpu_custom_call.1} parent=1 // loop_header
      %s19 = sphi 0, %s23
      %p20 = scmp.ge.s32.totalorder %s19, 4
      %s29 = sphi 0, %s31
      %s32 = sphi 0, %s29
      %s33 = sphi 0, %s32
      %s49 = sphi 0, %s33
      %s53 = sphi 0, %s53
      %s55 = sphi 0, %s53
      %s56 = sphi 0, %s55
      %s70 = sphi 0, %s56
      %s74 = sphi 0, %s74
      %s76 = sphi 0, %s74
      %s77 = sphi 0, %s76
      %s91 = sphi 0, %s77
      %s95 = sphi 0, %s95
      %s97 = sphi 0, %s95
      %s98 = sphi 0, %s97
      %s112 = sphi 0, %s98
      %s116 = sphi 0, %s116
      %s118 = sphi 0, %s116
      %s119 = sphi 0, %s118
      %s133 = sphi 0, %s119
      %s139 = sphi 0, %s141
      %s142 = sphi 0, %s139
      %s143 = sphi 0, %s142
      %s159 = sphi 0, %s143
    $region4: #{tpu_custom_call.1} parent=1 // loop_header_branch
      %22 = sbr.rel (%p20) target = $region8
    $region5: #{tpu_custom_call.1} parent=1 // loop_body
      %s24 = ssub.s32 %s19, 1
      %s25 = ssub.s32 %s19, 2
      %s26 = sadd.s32 %s19, 1
      %s27 = ssub.s32 %s19, %s26
      %p28 = scmp.eq.s32.totalorder %s27, 0
      %s30 = sadd.s32 %s29, 1
      %s31 = scalar_select %p28, %s29, %s30
      %p34 = pneg %p28
      %p35 = scmp.eq.s32.totalorder %s19, 1
      %p36 = por %p34, %p35
      %p37 = scmp.ne.s32.totalorder %s29, %s32
      %p38 = scmp.eq.s32.totalorder %s19, 0
      %p39 = por %p37, %p38
      %p40 = scmp.ne.s32.totalorder %s29, %s32
      %p41 = scmp.eq.s32.totalorder %s24, 1
      %p42 = por %p40, %p41
      %p43 = scmp.ne.s32.totalorder %s32, %s33
      %p44 = scmp.eq.s32.totalorder %s24, 0
      %p45 = por %p43, %p44
      %p46 = scmp.ne.s32.totalorder %s32, %s33
      %p47 = scmp.eq.s32.totalorder %s25, 1
      %p48 = por %p46, %p47
      %p50 = scmp.ne.s32.totalorder %s33, %s49
      %p51 = scmp.eq.s32.totalorder %s25, 0
      %p52 = por %p50, %p51
      %s54 = sadd.s32 %s53, 1
      %p57 = scmp.eq.s32.totalorder %s19, 1
      %p58 = scmp.ne.s32.totalorder %s53, %s55
      %p59 = scmp.eq.s32.totalorder %s19, 0
      %p60 = por %p58, %p59
      %p61 = scmp.ne.s32.totalorder %s53, %s55
      %p62 = scmp.eq.s32.totalorder %s24, 1
      %p63 = por %p61, %p62
      %p64 = scmp.ne.s32.totalorder %s55, %s56
      %p65 = scmp.eq.s32.totalorder %s24, 0
      %p66 = por %p64, %p65
      %p67 = scmp.ne.s32.totalorder %s55, %s56
      %p68 = scmp.eq.s32.totalorder %s25, 1
      %p69 = por %p67, %p68
      %p71 = scmp.ne.s32.totalorder %s56, %s70
      %p72 = scmp.eq.s32.totalorder %s25, 0
      %p73 = por %p71, %p72
      %s75 = sadd.s32 %s74, 1
      %p78 = scmp.eq.s32.totalorder %s19, 1
      %p79 = scmp.ne.s32.totalorder %s74, %s76
      %p80 = scmp.eq.s32.totalorder %s19, 0
      %p81 = por %p79, %p80
      %p82 = scmp.ne.s32.totalorder %s74, %s76
      %p83 = scmp.eq.s32.totalorder %s24, 1
      %p84 = por %p82, %p83
      %p85 = scmp.ne.s32.totalorder %s76, %s77
      %p86 = scmp.eq.s32.totalorder %s24, 0
      %p87 = por %p85, %p86
      %p88 = scmp.ne.s32.totalorder %s76, %s77
      %p89 = scmp.eq.s32.totalorder %s25, 1
      %p90 = por %p88, %p89
      %p92 = scmp.ne.s32.totalorder %s77, %s91
      %p93 = scmp.eq.s32.totalorder %s25, 0
      %p94 = por %p92, %p93
      %s96 = sadd.s32 %s95, 1
      %p99 = scmp.eq.s32.totalorder %s19, 1
      %p100 = scmp.ne.s32.totalorder %s95, %s97
      %p101 = scmp.eq.s32.totalorder %s19, 0
      %p102 = por %p100, %p101
      %p103 = scmp.ne.s32.totalorder %s95, %s97
      %p104 = scmp.eq.s32.totalorder %s24, 1
      %p105 = por %p103, %p104
      %p106 = scmp.ne.s32.totalorder %s97, %s98
      %p107 = scmp.eq.s32.totalorder %s24, 0
      %p108 = por %p106, %p107
      %p109 = scmp.ne.s32.totalorder %s97, %s98
      %p110 = scmp.eq.s32.totalorder %s25, 1
      %p111 = por %p109, %p110
      %p113 = scmp.ne.s32.totalorder %s98, %s112
      %p114 = scmp.eq.s32.totalorder %s25, 0
      %p115 = por %p113, %p114
      %s117 = sadd.s32 %s116, 1
      %p120 = scmp.eq.s32.totalorder %s19, 1
      %p121 = scmp.ne.s32.totalorder %s116, %s118
      %p122 = scmp.eq.s32.totalorder %s19, 0
      %p123 = por %p121, %p122
      %p124 = scmp.ne.s32.totalorder %s116, %s118
      %p125 = scmp.eq.s32.totalorder %s24, 1
      %p126 = por %p124, %p125
      %p127 = scmp.ne.s32.totalorder %s118, %s119
      %p128 = scmp.eq.s32.totalorder %s24, 0
      %p129 = por %p127, %p128
      %p130 = scmp.ne.s32.totalorder %s118, %s119
      %p131 = scmp.eq.s32.totalorder %s25, 1
      %p132 = por %p130, %p131
      %p134 = scmp.ne.s32.totalorder %s119, %s133
      %p135 = scmp.eq.s32.totalorder %s25, 0
      %p136 = por %p134, %p135
      %s137 = ssub.s32 %s19, %s26
      %p138 = scmp.eq.s32.totalorder %s137, 0
      %s140 = sadd.s32 %s139, 1
      %s141 = scalar_select %p138, %s139, %s140
      %p144 = pneg %p138
      %p145 = scmp.eq.s32.totalorder %s19, 1
      %p146 = por %p144, %p145
      %p147 = scmp.ne.s32.totalorder %s139, %s142
      %p148 = scmp.eq.s32.totalorder %s19, 0
      %p149 = por %p147, %p148
      %p150 = scmp.ne.s32.totalorder %s139, %s142
      %p151 = scmp.eq.s32.totalorder %s24, 1
      %p152 = por %p150, %p151
      %p153 = scmp.ne.s32.totalorder %s142, %s143
      %p154 = scmp.eq.s32.totalorder %s24, 0
      %p155 = por %p153, %p154
      %p156 = scmp.ne.s32.totalorder %s142, %s143
      %p157 = scmp.eq.s32.totalorder %s25, 1
      %p158 = por %p156, %p157
      %p160 = scmp.ne.s32.totalorder %s143, %s159
      %p161 = scmp.eq.s32.totalorder %s25, 0
      %p162 = por %p160, %p161
      %p163 = scmp.le.s32.totalorder 1, %s19
      %p164 = scmp.lt.s32.totalorder %s19, 3
      %p165 = pnand %p163, %p164
      %p166 = pneg %p165
      // Predicated region
      $region9: #{tpu_custom_call.1} parent=5 // pred_check
        _
      $region10: #{tpu_custom_call.1} parent=5 // pred_check_branch
        %168 = sbr.rel (%p165) target = $region12
      $region11: #{tpu_custom_call.1} parent=5 // pred_region
        %s169 = ssub.s32 %s19, 1
        // Predicated region
        $region13: #{tpu_custom_call.1} parent=11 // pred_check
          %p170 = pneg %p66
        $region14: #{tpu_custom_call.1} parent=11 // pred_check_branch
          %172 = sbr.rel (%p170) target = $region16
        $region15: #{tpu_custom_call.1} parent=11 // pred_region
          %s174 = ssub.s32 512, 512
          %175 = vsyncadd [#allocation6], %s174
          %s176 = sshll.u32 [#allocation5], 4
          %s177 = int_to_ptr.vmem [resolvable:$true] %s176
          %182 = dma.hbm_to_vmem [thread:$0]  %s1, 512, %s177, [#allocation6], 128, 128, 8
        $region16: #{tpu_custom_call.1} parent=11 // pred_fallthru
          _
        // Predicated region
        $region17: #{tpu_custom_call.1} parent=11 // pred_check
          %p183 = pneg %p87
        $region18: #{tpu_custom_call.1} parent=11 // pred_check_branch
          %185 = sbr.rel (%p183) target = $region20
        $region19: #{tpu_custom_call.1} parent=11 // pred_region
          %s187 = ssub.s32 64, 64
          %188 = vsyncadd [#allocation6], %s187
          %s190 = sshll.u32 [#allocation7], 4
          %s191 = int_to_ptr.vmem [resolvable:$true] %s190
          %193 = dma.hbm_to_vmem [thread:$0]  %s2, 64, %s191, [#allocation6]
        $region20: #{tpu_custom_call.1} parent=11 // pred_fallthru
          _
        // Predicated region
        $region21: #{tpu_custom_call.1} parent=11 // pred_check
          %p194 = pneg %p108
        $region22: #{tpu_custom_call.1} parent=11 // pred_check_branch
          %196 = sbr.rel (%p194) target = $region24
        $region23: #{tpu_custom_call.1} parent=11 // pred_region
          %s198 = ssub.s32 1024, 1024
          %199 = vsyncadd [#allocation9], %s198
          %s200 = sshll.u32 [#allocation8], 4
          %s201 = int_to_ptr.vmem [resolvable:$true] %s200
          %206 = dma.hbm_to_vmem [thread:$0]  %s3, 1024, %s201, [#allocation9], 64, 64, 4
        $region24: #{tpu_custom_call.1} parent=11 // pred_fallthru
          _
        // Predicated region
        $region25: #{tpu_custom_call.1} parent=11 // pred_check
          %p207 = pneg %p129
        $region26: #{tpu_custom_call.1} parent=11 // pred_check_branch
          %209 = sbr.rel (%p207) target = $region28
        $region27: #{tpu_custom_call.1} parent=11 // pred_region
          _
        $region28: #{tpu_custom_call.1} parent=11 // pred_fallthru
          _
      $region12: #{tpu_custom_call.1} parent=5 // pred_fallthru
        _
      %p210 = scmp.lt.s32.totalorder %s19, 2
      // Predicated region
      $region29: #{tpu_custom_call.1} parent=5 // pred_check
        %p211 = pneg %p210
      $region30: #{tpu_custom_call.1} parent=5 // pred_check_branch
        %213 = sbr.rel (%p211) target = $region32
      $region31: #{tpu_custom_call.1} parent=5 // pred_region
        // Predicated region
        $region33: #{tpu_custom_call.1} parent=31 // pred_check
          %p214 = pneg %p39
        $region34: #{tpu_custom_call.1} parent=31 // pred_check_branch
          %216 = sbr.rel (%p214) target = $region36
        $region35: #{tpu_custom_call.1} parent=31 // pred_region
          #allocation12 [shape = 'u32[6]{0}', space=smem, size = 0x18, scoped, tag = 'DMA stride descriptor']
          %s217 = sand.u32 %s29, 1
          %s218 = scalar_lea.sflag [#allocation3], %s217
          %s219 = sand.u32 %s29, 1
          %s220 = smul.addr %s219, 128
          %s221 = scalar_lea.vmem [#allocation2], %s220
          %s222 = smul.u32 2, %s19
          %s224 = ssub.s32 2048, 2048
          %225 = vsyncadd %s218, %s224
          %s226 = smul.addr %s222, 64
          %s227 = scalar_lea.hbm %s0, %s226
          %s229 = sshll.u32 1, 14
          %s230 = sxor.u32 4294967295, %s229
          %s232 = sld [smem:[#allocation0]]
          %s233 = sadd.s32 2, %s232
          %s235 = sshll.u32 7, 26
          %s236 = sxor.u32 4294967295, %s235
          %s237 = sand.u32 0, %s236
          %s238 = sshll.u32 %s233, 26
          %s239 = sor.u32 %s237, %s238
          %s240 = sshll.u32 %s221, 4
          %s241 = int_to_ptr.vmem [resolvable:$true] %s240
          %247 = sst [smem:[#allocation12]] 256
          %s248 = scalar_lea.smem [#allocation12], 1
          %249 = sst [smem:[%s248]] 128
          %s250 = scalar_lea.smem [#allocation12], 2
          %251 = sst [smem:[%s250]] 2
          %s252 = scalar_lea.smem [#allocation12], 3
          %253 = sst [smem:[%s252]] 64
          %s254 = scalar_lea.smem [#allocation12], 4
          %255 = sst [smem:[%s254]] 64
          %s256 = scalar_lea.smem [#allocation12], 5
          %257 = sst [smem:[%s256]] 4
          %259 = dma.general %s227, 2048, %s241, %s218, 131072, [#allocation12], %s239, 0
        $region36: #{tpu_custom_call.1} parent=31 // pred_fallthru
          _
      $region32: #{tpu_custom_call.1} parent=5 // pred_fallthru
        _
      %p260 = scmp.le.s32.totalorder 1, %s19
      %p261 = scmp.lt.s32.totalorder %s19, 3
      %p262 = pnand %p260, %p261
      %p263 = pneg %p262
      // Predicated region
      $region37: #{tpu_custom_call.1} parent=5 // pred_check
        _
      $region38: #{tpu_custom_call.1} parent=5 // pred_check_branch
        %265 = sbr.rel (%p262) target = $region40
      $region39: #{tpu_custom_call.1} parent=5 // pred_region
        %s266 = ssub.s32 %s19, 1
        %s267 = sand.u32 %s32, 1
        %s268 = scalar_lea.sflag [#allocation3], %s267
        %s269 = sand.u32 %s32, 1
        %s270 = smul.addr %s269, 128
        %s271 = scalar_lea.vmem [#allocation2], %s270
        // Predicated region
        $region41: #{tpu_custom_call.1} parent=39 // pred_check
          %p272 = pneg %p45
        $region42: #{tpu_custom_call.1} parent=39 // pred_check_branch
          %274 = sbr.rel (%p272) target = $region44
        $region43: #{tpu_custom_call.1} parent=39 // pred_region
          %275 = dma.done %s268, 2048
        $region44: #{tpu_custom_call.1} parent=39 // pred_fallthru
          _
        // Predicated region
        $region45: #{tpu_custom_call.1} parent=39 // pred_check
          %p276 = pneg %p66
        $region46: #{tpu_custom_call.1} parent=39 // pred_check_branch
          %278 = sbr.rel (%p276) target = $region48
        $region47: #{tpu_custom_call.1} parent=39 // pred_region
          %279 = dma.done [#allocation6], 512
        $region48: #{tpu_custom_call.1} parent=39 // pred_fallthru
          _
        // Predicated region
        $region49: #{tpu_custom_call.1} parent=39 // pred_check
          %p280 = pneg %p87
        $region50: #{tpu_custom_call.1} parent=39 // pred_check_branch
          %282 = sbr.rel (%p280) target = $region52
        $region51: #{tpu_custom_call.1} parent=39 // pred_region
          %283 = dma.done [#allocation6], 64
        $region52: #{tpu_custom_call.1} parent=39 // pred_fallthru
          _
        // Predicated region
        $region53: #{tpu_custom_call.1} parent=39 // pred_check
          %p284 = pneg %p108
        $region54: #{tpu_custom_call.1} parent=39 // pred_check_branch
          %286 = sbr.rel (%p284) target = $region56
        $region55: #{tpu_custom_call.1} parent=39 // pred_region
          %287 = dma.done [#allocation9], 1024
        $region56: #{tpu_custom_call.1} parent=39 // pred_fallthru
          _
        %s288 = sand.u32 %s32, 1
        %s289 = scalar_lea.sflag [#allocation3], %s288
        %s290 = sand.u32 %s32, 1
        %s291 = smul.addr %s290, 128
        %s292 = scalar_lea.vmem [#allocation2], %s291
        %p293 = pneg %p45
        %p294 = pneg %p42
        %p295 = pneg %p66
        %p296 = pneg %p63
        %p297 = pneg %p87
        %p298 = pneg %p84
        %p299 = pneg %p108
        %p300 = pneg %p105
        %p301 = pneg %p129
        %p302 = pneg %p126
        %p303 = pneg %p155
        %p304 = pneg %p152
        %s305 = sand.u32 %s142, 1
        %s306 = scalar_lea.sflag [#allocation4], %s305
        %s307 = sand.u32 %s142, 1
        %s308 = smul.addr %s307, 16
        %s309 = scalar_lea.vmem [#allocation10], %s308
        %s310 = smul.u32 2, %s24
        %s311 = smul.u32 2, %s24
        %v313 = vld [vmem:[%s271] sm:$0xf]
        %v314 = vld [vmem:[%s271 + $0x4] sm:$0xf]
        %v315 = vld [vmem:[%s271 + $0x8] sm:$0xf]
        %v316 = vld [vmem:[%s271 + $0xc] sm:$0xf]
        %v317 = vld [vmem:[%s271 + $0x10] sm:$0xf]
        %v318 = vld [vmem:[%s271 + $0x14] sm:$0xf]
        %v319 = vld [vmem:[%s271 + $0x18] sm:$0xf]
        %v320 = vld [vmem:[%s271 + $0x1c] sm:$0xf]
        %v321 = vld [vmem:[%s271 + $0x20] sm:$0xf]
        %v322 = vld [vmem:[%s271 + $0x24] sm:$0xf]
        %v323 = vld [vmem:[%s271 + $0x28] sm:$0xf]
        %v324 = vld [vmem:[%s271 + $0x2c] sm:$0xf]
        %v325 = vld [vmem:[%s271 + $0x30] sm:$0xf]
        %v326 = vld [vmem:[%s271 + $0x34] sm:$0xf]
        %v327 = vld [vmem:[%s271 + $0x38] sm:$0xf]
        %v328 = vld [vmem:[%s271 + $0x3c] sm:$0xf]
        %v329 = vld [vmem:[%s271 + $0x40] sm:$0xf]
        %v330 = vld [vmem:[%s271 + $0x44] sm:$0xf]
        %v331 = vld [vmem:[%s271 + $0x48] sm:$0xf]
        %v332 = vld [vmem:[%s271 + $0x4c] sm:$0xf]
        %v333 = vld [vmem:[%s271 + $0x50] sm:$0xf]
        %v334 = vld [vmem:[%s271 + $0x54] sm:$0xf]
        %v335 = vld [vmem:[%s271 + $0x58] sm:$0xf]
        %v336 = vld [vmem:[%s271 + $0x5c] sm:$0xf]
        %v337 = vld [vmem:[%s271 + $0x60] sm:$0xf]
        %v338 = vld [vmem:[%s271 + $0x64] sm:$0xf]
        %v339 = vld [vmem:[%s271 + $0x68] sm:$0xf]
        %v340 = vld [vmem:[%s271 + $0x6c] sm:$0xf]
        %v341 = vld [vmem:[%s271 + $0x70] sm:$0xf]
        %v342 = vld [vmem:[%s271 + $0x74] sm:$0xf]
        %v343 = vld [vmem:[%s271 + $0x78] sm:$0xf]
        %v344 = vld [vmem:[%s271 + $0x7c] sm:$0xf]
        %v345 = vld [vmem:[#allocation5] sm:$0xff]
        %v346 = vld [vmem:[#allocation5 + $0x8] sm:$0xff]
        %v347 = vld [vmem:[#allocation5 + $0x10] sm:$0xff]
        %v348 = vld [vmem:[#allocation5 + $0x18] sm:$0xff]
        %v381 = vunpack.c.l.b16 %v313
        %v382 = vunpack.c.l.b16 %v314
        %v383 = vunpack.c.l.b16 %v315
        %v384 = vunpack.c.l.b16 %v316
        %v385 = vunpack.c.l.b16 %v317
        %v386 = vunpack.c.l.b16 %v318
        %v387 = vunpack.c.l.b16 %v319
        %v388 = vunpack.c.l.b16 %v320
        %v389 = vunpack.c.l.b16 %v321
        %v390 = vunpack.c.l.b16 %v322
        %v391 = vunpack.c.l.b16 %v323
        %v392 = vunpack.c.l.b16 %v324
        %v393 = vunpack.c.l.b16 %v325
        %v394 = vunpack.c.l.b16 %v326
        %v395 = vunpack.c.l.b16 %v327
        %v396 = vunpack.c.l.b16 %v328
        %v397 = vunpack.c.l.b16 %v329
        %v398 = vunpack.c.l.b16 %v330
        %v399 = vunpack.c.l.b16 %v331
        %v400 = vunpack.c.l.b16 %v332
        %v401 = vunpack.c.l.b16 %v333
        %v402 = vunpack.c.l.b16 %v334
        %v403 = vunpack.c.l.b16 %v335
        %v404 = vunpack.c.l.b16 %v336
        %v405 = vunpack.c.l.b16 %v337
        %v406 = vunpack.c.l.b16 %v338
        %v407 = vunpack.c.l.b16 %v339
        %v408 = vunpack.c.l.b16 %v340
        %v409 = vunpack.c.l.b16 %v341
        %v410 = vunpack.c.l.b16 %v342
        %v411 = vunpack.c.l.b16 %v343
        %v412 = vunpack.c.l.b16 %v344
        %v413 = vpack.c.b16 %v382, %v381
        %v414 = vpack.c.b16 %v384, %v383
        %v415 = vpack.c.b16 %v386, %v385
        %v416 = vpack.c.b16 %v388, %v387
        %v417 = vpack.c.b16 %v390, %v389
        %v418 = vpack.c.b16 %v392, %v391
        %v419 = vpack.c.b16 %v394, %v393
        %v420 = vpack.c.b16 %v396, %v395
        %v421 = vpack.c.b16 %v398, %v397
        %v422 = vpack.c.b16 %v400, %v399
        %v423 = vpack.c.b16 %v402, %v401
        %v424 = vpack.c.b16 %v404, %v403
        %v425 = vpack.c.b16 %v406, %v405
        %v426 = vpack.c.b16 %v408, %v407
        %v427 = vpack.c.b16 %v410, %v409
        %v428 = vpack.c.b16 %v412, %v411
        %v433 = vunpack.c.l.b16 %v345
        %v434 = vunpack.c.h.b16 %v345
        %v435 = vunpack.c.l.b16 %v346
        %v436 = vunpack.c.h.b16 %v346
        %v437 = vunpack.c.l.b16 %v347
        %v438 = vunpack.c.h.b16 %v347
        %v439 = vunpack.c.l.b16 %v348
        %v440 = vunpack.c.h.b16 %v348
        %v441 = vpack.c.b16 %v435, %v433
        %v442 = vpack.c.b16 %v436, %v434
        %v443 = vpack.c.b16 %v439, %v437
        %v444 = vpack.c.b16 %v440, %v438
        %vm449 = vcmask 261120
        %v451 = vsel %vm449, %v413, 0
        %v454 = vsel %vm449, %v414, 0
        %v457 = vsel %vm449, %v415, 0
        %v460 = vsel %vm449, %v416, 0
        %v463 = vsel %vm449, %v417, 0
        %v466 = vsel %vm449, %v418, 0
        %v469 = vsel %vm449, %v419, 0
        %v472 = vsel %vm449, %v420, 0
        %v475 = vsel %vm449, %v421, 0
        %v478 = vsel %vm449, %v422, 0
        %v481 = vsel %vm449, %v423, 0
        %v484 = vsel %vm449, %v424, 0
        %v487 = vsel %vm449, %v425, 0
        %v490 = vsel %vm449, %v426, 0
        %v493 = vsel %vm449, %v427, 0
        %v496 = vsel %vm449, %v428, 0
        %498 = vmatprep.subr.bf16.mxu0 0
        %499 = vmatpush1.bf16.msra.mxu0 0
        %500 = vmatprep.subr.bf16.mxu0 0
        %501 = vmatpush1.bf16.msra.mxu0 0
        %502 = vmatprep.subr.bf16.mxu0 0
        %503 = vmatpush1.bf16.msra.mxu0 0
        %504 = vmatprep.subr.bf16.mxu0 0
        %505 = vmatpush1.bf16.msra.mxu0 0
        %506 = vmatprep.subr.bf16.mxu0 0
        %507 = vmatpush1.bf16.msra.mxu0 0
        %508 = vmatprep.subr.bf16.mxu0 0
        %509 = vmatpush1.bf16.msra.mxu0 0
        %510 = vmatprep.subr.bf16.mxu0 %v444
        %511 = vmatpush1.bf16.msra.mxu0 %v443
        %512 = vmatprep.subr.bf16.mxu0 %v442
        %513 = vmatpush1.bf16.msra.mxu0 %v441
        %514 = vmatprep.subr.bf16.mxu0 0
        %515 = vmatpush2.bf16.msra.mxu0 0
        %516 = vmatprep.subr.bf16.mxu0 0
        %517 = vmatpush2.bf16.msra.mxu0 0
        %518 = vmatprep.subr.bf16.mxu0 0
        %519 = vmatpush2.bf16.msra.mxu0 0
        %520 = vmatprep.subr.bf16.mxu0 0
        %521 = vmatpush2.bf16.msra.mxu0 0
        %522 = vmatprep.subr.bf16.mxu0 0
        %523 = vmatpush2.bf16.msra.mxu0 0
        %524 = vmatprep.subr.bf16.mxu0 0
        %525 = vmatpush2.bf16.msra.mxu0 0
        %526 = vmatprep.subr.bf16.mxu0 0
        %527 = vmatpush2.bf16.msra.mxu0 0
        %528 = vmatprep.subr.bf16.mxu0 0
        %529 = vmatpush2.bf16.msra.mxu0 0
        %530 = vmatprep.mubr.bf16.mxu0 0
        %531 = vmatmul.mubr.bf16.gmra.mxu0 %v451
        %v532 = vpop.f32.mrf.mxu0
        %v533 = vadd.f32 0.0, %v532
        %v534 = vpop.f32.mrf.mxu0
        %v535 = vadd.f32 0.0, %v534
        %v536 = vpop.f32.mrf.mxu0
        %v537 = vadd.f32 0.0, %v536
        %v538 = vpop.f32.mrf.mxu0
        %v539 = vadd.f32 0.0, %v538
        %540 = vmatprep.mubr.bf16.mxu0 0
        %541 = vmatmul.mubr.bf16.gmra.mxu0 %v454
        %v542 = vpop.f32.mrf.mxu0
        %v543 = vadd.f32 0.0, %v542
        %v544 = vpop.f32.mrf.mxu0
        %v545 = vadd.f32 0.0, %v544
        %v546 = vpop.f32.mrf.mxu0
        %v547 = vadd.f32 0.0, %v546
        %v548 = vpop.f32.mrf.mxu0
        %v549 = vadd.f32 0.0, %v548
        %550 = vmatprep.mubr.bf16.mxu0 0
        %551 = vmatmul.mubr.bf16.gmra.mxu0 %v457
        %v552 = vpop.f32.mrf.mxu0
        %v553 = vadd.f32 0.0, %v552
        %v554 = vpop.f32.mrf.mxu0
        %v555 = vadd.f32 0.0, %v554
        %v556 = vpop.f32.mrf.mxu0
        %v557 = vadd.f32 0.0, %v556
        %v558 = vpop.f32.mrf.mxu0
        %v559 = vadd.f32 0.0, %v558
        %560 = vmatprep.mubr.bf16.mxu0 0
        %561 = vmatmul.mubr.bf16.gmra.mxu0 %v460
        %v562 = vpop.f32.mrf.mxu0
        %v563 = vadd.f32 0.0, %v562
        %v564 = vpop.f32.mrf.mxu0
        %v565 = vadd.f32 0.0, %v564
        %v566 = vpop.f32.mrf.mxu0
        %v567 = vadd.f32 0.0, %v566
        %v568 = vpop.f32.mrf.mxu0
        %v569 = vadd.f32 0.0, %v568
        %570 = vmatprep.mubr.bf16.mxu0 0
        %571 = vmatmul.mubr.bf16.gmra.mxu0 %v463
        %v572 = vpop.f32.mrf.mxu0
        %v573 = vadd.f32 0.0, %v572
        %v574 = vpop.f32.mrf.mxu0
        %v575 = vadd.f32 0.0, %v574
        %v576 = vpop.f32.mrf.mxu0
        %v577 = vadd.f32 0.0, %v576
        %v578 = vpop.f32.mrf.mxu0
        %v579 = vadd.f32 0.0, %v578
        %580 = vmatprep.mubr.bf16.mxu0 0
        %581 = vmatmul.mubr.bf16.gmra.mxu0 %v466
        %v582 = vpop.f32.mrf.mxu0
        %v583 = vadd.f32 0.0, %v582
        %v584 = vpop.f32.mrf.mxu0
        %v585 = vadd.f32 0.0, %v584
        %v586 = vpop.f32.mrf.mxu0
        %v587 = vadd.f32 0.0, %v586
        %v588 = vpop.f32.mrf.mxu0
        %v589 = vadd.f32 0.0, %v588
        %590 = vmatprep.mubr.bf16.mxu0 0
        %591 = vmatmul.mubr.bf16.gmra.mxu0 %v469
        %v592 = vpop.f32.mrf.mxu0
        %v593 = vadd.f32 0.0, %v592
        %v594 = vpop.f32.mrf.mxu0
        %v595 = vadd.f32 0.0, %v594
        %v596 = vpop.f32.mrf.mxu0
        %v597 = vadd.f32 0.0, %v596
        %v598 = vpop.f32.mrf.mxu0
        %v599 = vadd.f32 0.0, %v598
        %600 = vmatprep.mubr.bf16.mxu0 0
        %601 = vmatmul.mubr.bf16.gmra.mxu0 %v472
        %v602 = vpop.f32.mrf.mxu0
        %v603 = vadd.f32 0.0, %v602
        %v604 = vpop.f32.mrf.mxu0
        %v605 = vadd.f32 0.0, %v604
        %v606 = vpop.f32.mrf.mxu0
        %v607 = vadd.f32 0.0, %v606
        %v608 = vpop.f32.mrf.mxu0
        %v609 = vadd.f32 0.0, %v608
        %610 = vmatprep.mubr.bf16.mxu0 0
        %611 = vmatmul.mubr.bf16.gmra.mxu0 %v475
        %v612 = vpop.f32.mrf.mxu0
        %v613 = vadd.f32 0.0, %v612
        %v614 = vpop.f32.mrf.mxu0
        %v615 = vadd.f32 0.0, %v614
        %v616 = vpop.f32.mrf.mxu0
        %v617 = vadd.f32 0.0, %v616
        %v618 = vpop.f32.mrf.mxu0
        %v619 = vadd.f32 0.0, %v618
        %620 = vmatprep.mubr.bf16.mxu0 0
        %621 = vmatmul.mubr.bf16.gmra.mxu0 %v478
        %v622 = vpop.f32.mrf.mxu0
        %v623 = vadd.f32 0.0, %v622
        %v624 = vpop.f32.mrf.mxu0
        %v625 = vadd.f32 0.0, %v624
        %v626 = vpop.f32.mrf.mxu0
        %v627 = vadd.f32 0.0, %v626
        %v628 = vpop.f32.mrf.mxu0
        %v629 = vadd.f32 0.0, %v628
        %630 = vmatprep.mubr.bf16.mxu0 0
        %631 = vmatmul.mubr.bf16.gmra.mxu0 %v481
        %v632 = vpop.f32.mrf.mxu0
        %v633 = vadd.f32 0.0, %v632
        %v634 = vpop.f32.mrf.mxu0
        %v635 = vadd.f32 0.0, %v634
        %v636 = vpop.f32.mrf.mxu0
        %v637 = vadd.f32 0.0, %v636
        %v638 = vpop.f32.mrf.mxu0
        %v639 = vadd.f32 0.0, %v638
        %640 = vmatprep.mubr.bf16.mxu0 0
        %641 = vmatmul.mubr.bf16.gmra.mxu0 %v484
        %v642 = vpop.f32.mrf.mxu0
        %v643 = vadd.f32 0.0, %v642
        %v644 = vpop.f32.mrf.mxu0
        %v645 = vadd.f32 0.0, %v644
        %v646 = vpop.f32.mrf.mxu0
        %v647 = vadd.f32 0.0, %v646
        %v648 = vpop.f32.mrf.mxu0
        %v649 = vadd.f32 0.0, %v648
        %650 = vmatprep.mubr.bf16.mxu0 0
        %651 = vmatmul.mubr.bf16.gmra.mxu0 %v487
        %v652 = vpop.f32.mrf.mxu0
        %v653 = vadd.f32 0.0, %v652
        %v654 = vpop.f32.mrf.mxu0
        %v655 = vadd.f32 0.0, %v654
        %v656 = vpop.f32.mrf.mxu0
        %v657 = vadd.f32 0.0, %v656
        %v658 = vpop.f32.mrf.mxu0
        %v659 = vadd.f32 0.0, %v658
        %660 = vmatprep.mubr.bf16.mxu0 0
        %661 = vmatmul.mubr.bf16.gmra.mxu0 %v490
        %v662 = vpop.f32.mrf.mxu0
        %v663 = vadd.f32 0.0, %v662
        %v664 = vpop.f32.mrf.mxu0
        %v665 = vadd.f32 0.0, %v664
        %v666 = vpop.f32.mrf.mxu0
        %v667 = vadd.f32 0.0, %v666
        %v668 = vpop.f32.mrf.mxu0
        %v669 = vadd.f32 0.0, %v668
        %670 = vmatprep.mubr.bf16.mxu0 0
        %671 = vmatmul.mubr.bf16.gmra.mxu0 %v493
        %v672 = vpop.f32.mrf.mxu0
        %v673 = vadd.f32 0.0, %v672
        %v674 = vpop.f32.mrf.mxu0
        %v675 = vadd.f32 0.0, %v674
        %v676 = vpop.f32.mrf.mxu0
        %v677 = vadd.f32 0.0, %v676
        %v678 = vpop.f32.mrf.mxu0
        %v679 = vadd.f32 0.0, %v678
        %680 = vmatprep.mubr.bf16.mxu0 0
        %681 = vmatmul.mubr.bf16.gmra.mxu0 %v496
        %v682 = vpop.f32.mrf.mxu0
        %v683 = vadd.f32 0.0, %v682
        %v684 = vpop.f32.mrf.mxu0
        %v685 = vadd.f32 0.0, %v684
        %v686 = vpop.f32.mrf.mxu0
        %v687 = vadd.f32 0.0, %v686
        %v688 = vpop.f32.mrf.mxu0
        %v689 = vadd.f32 0.0, %v688
        %690 = vdwg.mxu0
        %vm691 = vcmask 31744
        %v692 = vsel %vm691, %v535, -inf
        %v693 = vsel %vm691, %v545, -inf
        %v694 = vsel %vm691, %v555, -inf
        %v695 = vmax.f32 %v692, %v694
        %v696 = vsel %vm691, %v565, -inf
        %v697 = vmax.f32 %v693, %v696
        %v698 = vsel %vm691, %v575, -inf
        %v699 = vmax.f32 %v695, %v698
        %v700 = vsel %vm691, %v585, -inf
        %v701 = vmax.f32 %v697, %v700
        %v702 = vsel %vm691, %v595, -inf
        %v703 = vmax.f32 %v699, %v702
        %v704 = vsel %vm691, %v605, -inf
        %v705 = vmax.f32 %v701, %v704
        %v706 = vsel %vm691, %v615, -inf
        %v707 = vmax.f32 %v703, %v706
        %v708 = vsel %vm691, %v625, -inf
        %v709 = vmax.f32 %v705, %v708
        %v710 = vsel %vm691, %v635, -inf
        %v711 = vmax.f32 %v707, %v710
        %v712 = vsel %vm691, %v645, -inf
        %v713 = vmax.f32 %v709, %v712
        %v714 = vsel %vm691, %v655, -inf
        %v715 = vmax.f32 %v711, %v714
        %v716 = vsel %vm691, %v665, -inf
        %v717 = vmax.f32 %v713, %v716
        %v718 = vsel %vm691, %v675, -inf
        %v719 = vmax.f32 %v715, %v718
        %v720 = vsel %vm691, %v685, -inf
        %v721 = vmax.f32 %v717, %v720
        %v722 = vmax.f32 %v719, %v721
        %v723 = vsel %vm691, %v539, -inf
        %v724 = vsel %vm691, %v549, -inf
        %v725 = vsel %vm691, %v559, -inf
        %v726 = vmax.f32 %v723, %v725
        %v727 = vsel %vm691, %v569, -inf
        %v728 = vmax.f32 %v724, %v727
        %v729 = vsel %vm691, %v579, -inf
        %v730 = vmax.f32 %v726, %v729
        %v731 = vsel %vm691, %v589, -inf
        %v732 = vmax.f32 %v728, %v731
        %v733 = vsel %vm691, %v599, -inf
        %v734 = vmax.f32 %v730, %v733
        %v735 = vsel %vm691, %v609, -inf
        %v736 = vmax.f32 %v732, %v735
        %v737 = vsel %vm691, %v619, -inf
        %v738 = vmax.f32 %v734, %v737
        %v739 = vsel %vm691, %v629, -inf
        %v740 = vmax.f32 %v736, %v739
        %v741 = vsel %vm691, %v639, -inf
        %v742 = vmax.f32 %v738, %v741
        %v743 = vsel %vm691, %v649, -inf
        %v744 = vmax.f32 %v740, %v743
        %v745 = vsel %vm691, %v659, -inf
        %v746 = vmax.f32 %v742, %v745
        %v747 = vsel %vm691, %v669, -inf
        %v748 = vmax.f32 %v744, %v747
        %v749 = vsel %vm691, %v679, -inf
        %v750 = vmax.f32 %v746, %v749
        %v751 = vsel %vm691, %v689, -inf
        %v752 = vmax.f32 %v748, %v751
        %v753 = vmax.f32 %v750, %v752
        %v754 = vsub.f32 %v535, %v722
        %v755 = vsub.f32 %v539, %v753
        %v756 = vsub.f32 %v545, %v722
        %v757 = vsub.f32 %v549, %v753
        %v758 = vsub.f32 %v555, %v722
        %v759 = vsub.f32 %v559, %v753
        %v760 = vsub.f32 %v565, %v722
        %v761 = vsub.f32 %v569, %v753
        %v762 = vsub.f32 %v575, %v722
        %v763 = vsub.f32 %v579, %v753
        %v764 = vsub.f32 %v585, %v722
        %v765 = vsub.f32 %v589, %v753
        %v766 = vsub.f32 %v595, %v722
        %v767 = vsub.f32 %v599, %v753
        %v768 = vsub.f32 %v605, %v722
        %v769 = vsub.f32 %v609, %v753
        %v770 = vsub.f32 %v615, %v722
        %v771 = vsub.f32 %v619, %v753
        %v772 = vsub.f32 %v625, %v722
        %v773 = vsub.f32 %v629, %v753
        %v774 = vsub.f32 %v635, %v722
        %v775 = vsub.f32 %v639, %v753
        %v776 = vsub.f32 %v645, %v722
        %v777 = vsub.f32 %v649, %v753
        %v778 = vsub.f32 %v655, %v722
        %v779 = vsub.f32 %v659, %v753
        %v780 = vsub.f32 %v665, %v722
        %v781 = vsub.f32 %v669, %v753
        %v782 = vsub.f32 %v675, %v722
        %v783 = vsub.f32 %v679, %v753
        %v784 = vsub.f32 %v685, %v722
        %v785 = vsub.f32 %v689, %v753
        %v786 = vmul.f32 %v754, 1.442695
        %v787 = vpow.pop %v786
        %v788 = vmul.f32 %v755, 1.442695
        %v789 = vpow.pop %v788
        %v790 = vmul.f32 %v756, 1.442695
        %v791 = vpow.pop %v790
        %v792 = vmul.f32 %v757, 1.442695
        %v793 = vpow.pop %v792
        %v794 = vmul.f32 %v758, 1.442695
        %v795 = vpow.pop %v794
        %v796 = vmul.f32 %v759, 1.442695
        %v797 = vpow.pop %v796
        %v798 = vmul.f32 %v760, 1.442695
        %v799 = vpow.pop %v798
        %v800 = vmul.f32 %v761, 1.442695
        %v801 = vpow.pop %v800
        %v802 = vmul.f32 %v762, 1.442695
        %v803 = vpow.pop %v802
        %v804 = vmul.f32 %v763, 1.442695
        %v805 = vpow.pop %v804
        %v806 = vmul.f32 %v764, 1.442695
        %v807 = vpow.pop %v806
        %v808 = vmul.f32 %v765, 1.442695
        %v809 = vpow.pop %v808
        %v810 = vmul.f32 %v766, 1.442695
        %v811 = vpow.pop %v810
        %v812 = vmul.f32 %v767, 1.442695
        %v813 = vpow.pop %v812
        %v814 = vmul.f32 %v768, 1.442695
        %v815 = vpow.pop %v814
        %v816 = vmul.f32 %v769, 1.442695
        %v817 = vpow.pop %v816
        %v818 = vmul.f32 %v770, 1.442695
        %v819 = vpow.pop %v818
        %v820 = vmul.f32 %v771, 1.442695
        %v821 = vpow.pop %v820
        %v822 = vmul.f32 %v772, 1.442695
        %v823 = vpow.pop %v822
        %v824 = vmul.f32 %v773, 1.442695
        %v825 = vpow.pop %v824
        %v826 = vmul.f32 %v774, 1.442695
        %v827 = vpow.pop %v826
        %v828 = vmul.f32 %v775, 1.442695
        %v829 = vpow.pop %v828
        %v830 = vmul.f32 %v776, 1.442695
        %v831 = vpow.pop %v830
        %v832 = vmul.f32 %v777, 1.442695
        %v833 = vpow.pop %v832
        %v834 = vmul.f32 %v778, 1.442695
        %v835 = vpow.pop %v834
        %v836 = vmul.f32 %v779, 1.442695
        %v837 = vpow.pop %v836
        %v838 = vmul.f32 %v780, 1.442695
        %v839 = vpow.pop %v838
        %v840 = vmul.f32 %v781, 1.442695
        %v841 = vpow.pop %v840
        %v842 = vmul.f32 %v782, 1.442695
        %v843 = vpow.pop %v842
        %v844 = vmul.f32 %v783, 1.442695
        %v845 = vpow.pop %v844
        %v846 = vmul.f32 %v784, 1.442695
        %v847 = vpow.pop %v846
        %v848 = vmul.f32 %v785, 1.442695
        %v849 = vpow.pop %v848
        %v850 = vsel %vm691, %v787, 0.0
        %v851 = vsel %vm691, %v791, 0.0
        %v852 = vadd.f32 %v850, %v851
        %v853 = vsel %vm691, %v795, 0.0
        %v854 = vadd.f32 %v852, %v853
        %v855 = vsel %vm691, %v799, 0.0
        %v856 = vadd.f32 %v854, %v855
        %v857 = vsel %vm691, %v803, 0.0
        %v858 = vadd.f32 %v856, %v857
        %v859 = vsel %vm691, %v807, 0.0
        %v860 = vadd.f32 %v858, %v859
        %v861 = vsel %vm691, %v811, 0.0
        %v862 = vadd.f32 %v860, %v861
        %v863 = vsel %vm691, %v815, 0.0
        %v864 = vadd.f32 %v862, %v863
        %v865 = vsel %vm691, %v819, 0.0
        %v866 = vadd.f32 %v864, %v865
        %v867 = vsel %vm691, %v823, 0.0
        %v868 = vadd.f32 %v866, %v867
        %v869 = vsel %vm691, %v827, 0.0
        %v870 = vadd.f32 %v868, %v869
        %v871 = vsel %vm691, %v831, 0.0
        %v872 = vadd.f32 %v870, %v871
        %v873 = vsel %vm691, %v835, 0.0
        %v874 = vadd.f32 %v872, %v873
        %v875 = vsel %vm691, %v839, 0.0
        %v876 = vadd.f32 %v874, %v875
        %v877 = vsel %vm691, %v843, 0.0
        %v878 = vadd.f32 %v876, %v877
        %v879 = vsel %vm691, %v847, 0.0
        %v880 = vadd.f32 %v878, %v879
        %v881 = vsel %vm691, %v789, 0.0
        %v882 = vsel %vm691, %v793, 0.0
        %v883 = vadd.f32 %v881, %v882
        %v884 = vsel %vm691, %v797, 0.0
        %v885 = vadd.f32 %v883, %v884
        %v886 = vsel %vm691, %v801, 0.0
        %v887 = vadd.f32 %v885, %v886
        %v888 = vsel %vm691, %v805, 0.0
        %v889 = vadd.f32 %v887, %v888
        %v890 = vsel %vm691, %v809, 0.0
        %v891 = vadd.f32 %v889, %v890
        %v892 = vsel %vm691, %v813, 0.0
        %v893 = vadd.f32 %v891, %v892
        %v894 = vsel %vm691, %v817, 0.0
        %v895 = vadd.f32 %v893, %v894
        %v896 = vsel %vm691, %v821, 0.0
        %v897 = vadd.f32 %v895, %v896
        %v898 = vsel %vm691, %v825, 0.0
        %v899 = vadd.f32 %v897, %v898
        %v900 = vsel %vm691, %v829, 0.0
        %v901 = vadd.f32 %v899, %v900
        %v902 = vsel %vm691, %v833, 0.0
        %v903 = vadd.f32 %v901, %v902
        %v904 = vsel %vm691, %v837, 0.0
        %v905 = vadd.f32 %v903, %v904
        %v906 = vsel %vm691, %v841, 0.0
        %v907 = vadd.f32 %v905, %v906
        %v908 = vsel %vm691, %v845, 0.0
        %v909 = vadd.f32 %v907, %v908
        %v910 = vsel %vm691, %v849, 0.0
        %v911 = vadd.f32 %v909, %v910
        %v912 = vld [vmem:[#allocation7] sm:$0xf]
        %v914 = vsel %vm691, %v787, 0
        %v917 = vsel %vm691, %v789, 0
        %v920 = vsel %vm691, %v791, 0
        %v923 = vsel %vm691, %v793, 0
        %v926 = vsel %vm691, %v795, 0
        %v929 = vsel %vm691, %v797, 0
        %v932 = vsel %vm691, %v799, 0
        %v935 = vsel %vm691, %v801, 0
        %v938 = vsel %vm691, %v803, 0
        %v941 = vsel %vm691, %v805, 0
        %v944 = vsel %vm691, %v807, 0
        %v947 = vsel %vm691, %v809, 0
        %v950 = vsel %vm691, %v811, 0
        %v953 = vsel %vm691, %v813, 0
        %v956 = vsel %vm691, %v815, 0
        %v959 = vsel %vm691, %v817, 0
        %v962 = vsel %vm691, %v819, 0
        %v965 = vsel %vm691, %v821, 0
        %v968 = vsel %vm691, %v823, 0
        %v971 = vsel %vm691, %v825, 0
        %v974 = vsel %vm691, %v827, 0
        %v977 = vsel %vm691, %v829, 0
        %v980 = vsel %vm691, %v831, 0
        %v983 = vsel %vm691, %v833, 0
        %v986 = vsel %vm691, %v835, 0
        %v989 = vsel %vm691, %v837, 0
        %v992 = vsel %vm691, %v839, 0
        %v995 = vsel %vm691, %v841, 0
        %v998 = vsel %vm691, %v843, 0
        %v1001 = vsel %vm691, %v845, 0
        %v1004 = vsel %vm691, %v847, 0
        %v1007 = vsel %vm691, %v849, 0
        %vm1009 = vcmask 1043456
        %v1011 = vsel %vm1009, %v912, 0
        %1013 = vmatprep.subr.mxu0 0.0
        %1014 = vmatpush1.msra.mxu0 0.0
        %1015 = vmatprep.subr.mxu0 0.0
        %1016 = vmatpush1.msra.mxu0 0.0
        %1017 = vmatprep.subr.mxu0 0.0
        %1018 = vmatpush1.msra.mxu0 0.0
        %1019 = vmatprep.subr.mxu0 0.0
        %1020 = vmatpush1.msra.mxu0 0.0
        %1021 = vmatprep.subr.mxu0 0.0
        %1022 = vmatpush1.msra.mxu0 0.0
        %1023 = vmatprep.subr.mxu0 0.0
        %1024 = vmatpush1.msra.mxu0 0.0
        %1025 = vmatprep.subr.mxu0 0.0
        %1026 = vmatpush1.msra.mxu0 0.0
        %1027 = vmatprep.subr.mxu0 0.0
        %1028 = vmatpush1.msra.mxu0 0.0
        %1029 = vmatprep.subr.mxu0 0.0
        %1030 = vmatpush1.msra.mxu0 0.0
        %1031 = vmatprep.subr.mxu0 0.0
        %1032 = vmatpush1.msra.mxu0 0.0
        %1033 = vmatprep.subr.mxu0 0.0
        %1034 = vmatpush1.msra.mxu0 0.0
        %1035 = vmatprep.subr.mxu0 0.0
        %1036 = vmatpush1.msra.mxu0 0.0
        %1037 = vmatprep.subr.mxu0 0.0
        %1038 = vmatpush1.msra.mxu0 0.0
        %1039 = vmatprep.subr.mxu0 0.0
        %1040 = vmatpush1.msra.mxu0 0.0
        %1041 = vmatprep.subr.mxu0 0.0
        %1042 = vmatpush1.msra.mxu0 0.0
        %1043 = vmatprep.subr.mxu0 0.0
        %1044 = vmatpush1.msra.mxu0 %v1011
        %1045 = vmatprep.subr.mxu0 0.0
        %1046 = vmatpush2.msra.mxu0 0.0
        %1047 = vmatprep.subr.mxu0 0.0
        %1048 = vmatpush2.msra.mxu0 0.0
        %1049 = vmatprep.subr.mxu0 0.0
        %1050 = vmatpush2.msra.mxu0 0.0
        %1051 = vmatprep.subr.mxu0 0.0
        %1052 = vmatpush2.msra.mxu0 0.0
        %1053 = vmatprep.subr.mxu0 0.0
        %1054 = vmatpush2.msra.mxu0 0.0
        %1055 = vmatprep.subr.mxu0 0.0
        %1056 = vmatpush2.msra.mxu0 0.0
        %1057 = vmatprep.subr.mxu0 0.0
        %1058 = vmatpush2.msra.mxu0 0.0
        %1059 = vmatprep.subr.mxu0 0.0
        %1060 = vmatpush2.msra.mxu0 0.0
        %1061 = vmatprep.subr.mxu0 0.0
        %1062 = vmatpush2.msra.mxu0 0.0
        %1063 = vmatprep.subr.mxu0 0.0
        %1064 = vmatpush2.msra.mxu0 0.0
        %1065 = vmatprep.subr.mxu0 0.0
        %1066 = vmatpush2.msra.mxu0 0.0
        %1067 = vmatprep.subr.mxu0 0.0
        %1068 = vmatpush2.msra.mxu0 0.0
        %1069 = vmatprep.subr.mxu0 0.0
        %1070 = vmatpush2.msra.mxu0 0.0
        %1071 = vmatprep.subr.mxu0 0.0
        %1072 = vmatpush2.msra.mxu0 0.0
        %1073 = vmatprep.subr.mxu0 0.0
        %1074 = vmatpush2.msra.mxu0 0.0
        %1075 = vmatprep.subr.mxu0 0.0
        %1076 = vmatpush2.msra.mxu0 0.0
        %1077 = vmatprep.mubr.f32.mxu0 0.0
        %1078 = vmatmul.mubr.f32.gmra.mxu0 %v914
        %v1079 = vpop.f32.mrf.mxu0
        %v1080 = vadd.f32 0.0, %v1079
        %v1081 = vpop.f32.mrf.mxu0
        %1082 = vmatprep.mubr.f32.mxu0 0.0
        %1083 = vmatmul.mubr.f32.gmra.mxu0 %v917
        %v1084 = vpop.f32.mrf.mxu0
        %v1085 = vadd.f32 0.0, %v1084
        %v1086 = vpop.f32.mrf.mxu0
        %1087 = vmatprep.mubr.f32.mxu0 0.0
        %1088 = vmatmul.mubr.f32.gmra.mxu0 %v920
        %v1089 = vpop.f32.mrf.mxu0
        %v1090 = vadd.f32 0.0, %v1089
        %v1091 = vpop.f32.mrf.mxu0
        %1092 = vmatprep.mubr.f32.mxu0 0.0
        %1093 = vmatmul.mubr.f32.gmra.mxu0 %v923
        %v1094 = vpop.f32.mrf.mxu0
        %v1095 = vadd.f32 0.0, %v1094
        %v1096 = vpop.f32.mrf.mxu0
        %1097 = vmatprep.mubr.f32.mxu0 0.0
        %1098 = vmatmul.mubr.f32.gmra.mxu0 %v926
        %v1099 = vpop.f32.mrf.mxu0
        %v1100 = vadd.f32 0.0, %v1099
        %v1101 = vpop.f32.mrf.mxu0
        %1102 = vmatprep.mubr.f32.mxu0 0.0
        %1103 = vmatmul.mubr.f32.gmra.mxu0 %v929
        %v1104 = vpop.f32.mrf.mxu0
        %v1105 = vadd.f32 0.0, %v1104
        %v1106 = vpop.f32.mrf.mxu0
        %1107 = vmatprep.mubr.f32.mxu0 0.0
        %1108 = vmatmul.mubr.f32.gmra.mxu0 %v932
        %v1109 = vpop.f32.mrf.mxu0
        %v1110 = vadd.f32 0.0, %v1109
        %v1111 = vpop.f32.mrf.mxu0
        %1112 = vmatprep.mubr.f32.mxu0 0.0
        %1113 = vmatmul.mubr.f32.gmra.mxu0 %v935
        %v1114 = vpop.f32.mrf.mxu0
        %v1115 = vadd.f32 0.0, %v1114
        %v1116 = vpop.f32.mrf.mxu0
        %1117 = vmatprep.mubr.f32.mxu0 0.0
        %1118 = vmatmul.mubr.f32.gmra.mxu0 %v938
        %v1119 = vpop.f32.mrf.mxu0
        %v1120 = vadd.f32 0.0, %v1119
        %v1121 = vpop.f32.mrf.mxu0
        %1122 = vmatprep.mubr.f32.mxu0 0.0
        %1123 = vmatmul.mubr.f32.gmra.mxu0 %v941
        %v1124 = vpop.f32.mrf.mxu0
        %v1125 = vadd.f32 0.0, %v1124
        %v1126 = vpop.f32.mrf.mxu0
        %1127 = vmatprep.mubr.f32.mxu0 0.0
        %1128 = vmatmul.mubr.f32.gmra.mxu0 %v944
        %v1129 = vpop.f32.mrf.mxu0
        %v1130 = vadd.f32 0.0, %v1129
        %v1131 = vpop.f32.mrf.mxu0
        %1132 = vmatprep.mubr.f32.mxu0 0.0
        %1133 = vmatmul.mubr.f32.gmra.mxu0 %v947
        %v1134 = vpop.f32.mrf.mxu0
        %v1135 = vadd.f32 0.0, %v1134
        %v1136 = vpop.f32.mrf.mxu0
        %1137 = vmatprep.mubr.f32.mxu0 0.0
        %1138 = vmatmul.mubr.f32.gmra.mxu0 %v950
        %v1139 = vpop.f32.mrf.mxu0
        %v1140 = vadd.f32 0.0, %v1139
        %v1141 = vpop.f32.mrf.mxu0
        %1142 = vmatprep.mubr.f32.mxu0 0.0
        %1143 = vmatmul.mubr.f32.gmra.mxu0 %v953
        %v1144 = vpop.f32.mrf.mxu0
        %v1145 = vadd.f32 0.0, %v1144
        %v1146 = vpop.f32.mrf.mxu0
        %1147 = vmatprep.mubr.f32.mxu0 0.0
        %1148 = vmatmul.mubr.f32.gmra.mxu0 %v956
        %v1149 = vpop.f32.mrf.mxu0
        %v1150 = vadd.f32 0.0, %v1149
        %v1151 = vpop.f32.mrf.mxu0
        %1152 = vmatprep.mubr.f32.mxu0 0.0
        %1153 = vmatmul.mubr.f32.gmra.mxu0 %v959
        %v1154 = vpop.f32.mrf.mxu0
        %v1155 = vadd.f32 0.0, %v1154
        %v1156 = vpop.f32.mrf.mxu0
        %1157 = vmatprep.mubr.f32.mxu0 0.0
        %1158 = vmatmul.mubr.f32.gmra.mxu0 %v962
        %v1159 = vpop.f32.mrf.mxu0
        %v1160 = vadd.f32 0.0, %v1159
        %v1161 = vpop.f32.mrf.mxu0
        %1162 = vmatprep.mubr.f32.mxu0 0.0
        %1163 = vmatmul.mubr.f32.gmra.mxu0 %v965
        %v1164 = vpop.f32.mrf.mxu0
        %v1165 = vadd.f32 0.0, %v1164
        %v1166 = vpop.f32.mrf.mxu0
        %1167 = vmatprep.mubr.f32.mxu0 0.0
        %1168 = vmatmul.mubr.f32.gmra.mxu0 %v968
        %v1169 = vpop.f32.mrf.mxu0
        %v1170 = vadd.f32 0.0, %v1169
        %v1171 = vpop.f32.mrf.mxu0
        %1172 = vmatprep.mubr.f32.mxu0 0.0
        %1173 = vmatmul.mubr.f32.gmra.mxu0 %v971
        %v1174 = vpop.f32.mrf.mxu0
        %v1175 = vadd.f32 0.0, %v1174
        %v1176 = vpop.f32.mrf.mxu0
        %1177 = vmatprep.mubr.f32.mxu0 0.0
        %1178 = vmatmul.mubr.f32.gmra.mxu0 %v974
        %v1179 = vpop.f32.mrf.mxu0
        %v1180 = vadd.f32 0.0, %v1179
        %v1181 = vpop.f32.mrf.mxu0
        %1182 = vmatprep.mubr.f32.mxu0 0.0
        %1183 = vmatmul.mubr.f32.gmra.mxu0 %v977
        %v1184 = vpop.f32.mrf.mxu0
        %v1185 = vadd.f32 0.0, %v1184
        %v1186 = vpop.f32.mrf.mxu0
        %1187 = vmatprep.mubr.f32.mxu0 0.0
        %1188 = vmatmul.mubr.f32.gmra.mxu0 %v980
        %v1189 = vpop.f32.mrf.mxu0
        %v1190 = vadd.f32 0.0, %v1189
        %v1191 = vpop.f32.mrf.mxu0
        %1192 = vmatprep.mubr.f32.mxu0 0.0
        %1193 = vmatmul.mubr.f32.gmra.mxu0 %v983
        %v1194 = vpop.f32.mrf.mxu0
        %v1195 = vadd.f32 0.0, %v1194
        %v1196 = vpop.f32.mrf.mxu0
        %1197 = vmatprep.mubr.f32.mxu0 0.0
        %1198 = vmatmul.mubr.f32.gmra.mxu0 %v986
        %v1199 = vpop.f32.mrf.mxu0
        %v1200 = vadd.f32 0.0, %v1199
        %v1201 = vpop.f32.mrf.mxu0
        %1202 = vmatprep.mubr.f32.mxu0 0.0
        %1203 = vmatmul.mubr.f32.gmra.mxu0 %v989
        %v1204 = vpop.f32.mrf.mxu0
        %v1205 = vadd.f32 0.0, %v1204
        %v1206 = vpop.f32.mrf.mxu0
        %1207 = vmatprep.mubr.f32.mxu0 0.0
        %1208 = vmatmul.mubr.f32.gmra.mxu0 %v992
        %v1209 = vpop.f32.mrf.mxu0
        %v1210 = vadd.f32 0.0, %v1209
        %v1211 = vpop.f32.mrf.mxu0
        %1212 = vmatprep.mubr.f32.mxu0 0.0
        %1213 = vmatmul.mubr.f32.gmra.mxu0 %v995
        %v1214 = vpop.f32.mrf.mxu0
        %v1215 = vadd.f32 0.0, %v1214
        %v1216 = vpop.f32.mrf.mxu0
        %1217 = vmatprep.mubr.f32.mxu0 0.0
        %1218 = vmatmul.mubr.f32.gmra.mxu0 %v998
        %v1219 = vpop.f32.mrf.mxu0
        %v1220 = vadd.f32 0.0, %v1219
        %v1221 = vpop.f32.mrf.mxu0
        %1222 = vmatprep.mubr.f32.mxu0 0.0
        %1223 = vmatmul.mubr.f32.gmra.mxu0 %v1001
        %v1224 = vpop.f32.mrf.mxu0
        %v1225 = vadd.f32 0.0, %v1224
        %v1226 = vpop.f32.mrf.mxu0
        %1227 = vmatprep.mubr.f32.mxu0 0.0
        %1228 = vmatmul.mubr.f32.gmra.mxu0 %v1004
        %v1229 = vpop.f32.mrf.mxu0
        %v1230 = vadd.f32 0.0, %v1229
        %v1231 = vpop.f32.mrf.mxu0
        %1232 = vmatprep.mubr.f32.mxu0 0.0
        %1233 = vmatmul.mubr.f32.gmra.mxu0 %v1007
        %v1234 = vpop.f32.mrf.mxu0
        %v1235 = vadd.f32 0.0, %v1234
        %v1236 = vpop.f32.mrf.mxu0
        %1237 = vdwg.mxu0
        %v1238 = vmul.f32 %v533, %v1080
        %v1239 = vmul.f32 %v537, %v1085
        %v1240 = vmul.f32 %v543, %v1090
        %v1241 = vmul.f32 %v547, %v1095
        %v1242 = vmul.f32 %v553, %v1100
        %v1243 = vmul.f32 %v557, %v1105
        %v1244 = vmul.f32 %v563, %v1110
        %v1245 = vmul.f32 %v567, %v1115
        %v1246 = vmul.f32 %v573, %v1120
        %v1247 = vmul.f32 %v577, %v1125
        %v1248 = vmul.f32 %v583, %v1130
        %v1249 = vmul.f32 %v587, %v1135
        %v1250 = vmul.f32 %v593, %v1140
        %v1251 = vmul.f32 %v597, %v1145
        %v1252 = vmul.f32 %v603, %v1150
        %v1253 = vmul.f32 %v607, %v1155
        %v1254 = vmul.f32 %v613, %v1160
        %v1255 = vmul.f32 %v617, %v1165
        %v1256 = vmul.f32 %v623, %v1170
        %v1257 = vmul.f32 %v627, %v1175
        %v1258 = vmul.f32 %v633, %v1180
        %v1259 = vmul.f32 %v637, %v1185
        %v1260 = vmul.f32 %v643, %v1190
        %v1261 = vmul.f32 %v647, %v1195
        %v1262 = vmul.f32 %v653, %v1200
        %v1263 = vmul.f32 %v657, %v1205
        %v1264 = vmul.f32 %v663, %v1210
        %v1265 = vmul.f32 %v667, %v1215
        %v1266 = vmul.f32 %v673, %v1220
        %v1267 = vmul.f32 %v677, %v1225
        %v1268 = vmul.f32 %v683, %v1230
        %v1269 = vmul.f32 %v687, %v1235
        %v1270 = vadd.f32 %v1238, %v1240
        %v1271 = vadd.f32 %v1270, %v1242
        %v1272 = vadd.f32 %v1271, %v1244
        %v1273 = vadd.f32 %v1272, %v1246
        %v1274 = vadd.f32 %v1273, %v1248
        %v1275 = vadd.f32 %v1274, %v1250
        %v1276 = vadd.f32 %v1275, %v1252
        %v1277 = vadd.f32 %v1276, %v1254
        %v1278 = vadd.f32 %v1277, %v1256
        %v1279 = vadd.f32 %v1278, %v1258
        %v1280 = vadd.f32 %v1279, %v1260
        %v1281 = vadd.f32 %v1280, %v1262
        %v1282 = vadd.f32 %v1281, %v1264
        %v1283 = vadd.f32 %v1282, %v1266
        %v1284 = vadd.f32 %v1283, %v1268
        %v1285 = vadd.f32 %v1239, %v1241
        %v1286 = vadd.f32 %v1285, %v1243
        %v1287 = vadd.f32 %v1286, %v1245
        %v1288 = vadd.f32 %v1287, %v1247
        %v1289 = vadd.f32 %v1288, %v1249
        %v1290 = vadd.f32 %v1289, %v1251
        %v1291 = vadd.f32 %v1290, %v1253
        %v1292 = vadd.f32 %v1291, %v1255
        %v1293 = vadd.f32 %v1292, %v1257
        %v1294 = vadd.f32 %v1293, %v1259
        %v1295 = vadd.f32 %v1294, %v1261
        %v1296 = vadd.f32 %v1295, %v1263
        %v1297 = vadd.f32 %v1296, %v1265
        %v1298 = vadd.f32 %v1297, %v1267
        %v1299 = vadd.f32 %v1298, %v1269
        %v1301 = vsel %vm691, %v880, 0
        %v1304 = vsel %vm691, %v911, 0
        %1306 = vmatprep.subr.mxu0 0.0
        %1307 = vmatpush1.msra.mxu0 0.0
        %1308 = vmatprep.subr.mxu0 0.0
        %1309 = vmatpush1.msra.mxu0 0.0
        %1310 = vmatprep.subr.mxu0 0.0
        %1311 = vmatpush1.msra.mxu0 0.0
        %1312 = vmatprep.subr.mxu0 0.0
        %1313 = vmatpush1.msra.mxu0 0.0
        %1314 = vmatprep.subr.mxu0 0.0
        %1315 = vmatpush1.msra.mxu0 0.0
        %1316 = vmatprep.subr.mxu0 0.0
        %1317 = vmatpush1.msra.mxu0 0.0
        %1318 = vmatprep.subr.mxu0 0.0
        %1319 = vmatpush1.msra.mxu0 0.0
        %1320 = vmatprep.subr.mxu0 0.0
        %1321 = vmatpush1.msra.mxu0 0.0
        %1322 = vmatprep.subr.mxu0 0.0
        %1323 = vmatpush1.msra.mxu0 0.0
        %1324 = vmatprep.subr.mxu0 0.0
        %1325 = vmatpush1.msra.mxu0 0.0
        %1326 = vmatprep.subr.mxu0 0.0
        %1327 = vmatpush1.msra.mxu0 0.0
        %1328 = vmatprep.subr.mxu0 0.0
        %1329 = vmatpush1.msra.mxu0 0.0
        %1330 = vmatprep.subr.mxu0 0.0
        %1331 = vmatpush1.msra.mxu0 0.0
        %1332 = vmatprep.subr.mxu0 0.0
        %1333 = vmatpush1.msra.mxu0 0.0
        %1334 = vmatprep.subr.mxu0 0.0
        %1335 = vmatpush1.msra.mxu0 0.0
        %1336 = vmatprep.subr.mxu0 0.0
        %1337 = vmatpush1.msra.mxu0 %v1011
        %1338 = vmatprep.subr.mxu0 0.0
        %1339 = vmatpush2.msra.mxu0 0.0
        %1340 = vmatprep.subr.mxu0 0.0
        %1341 = vmatpush2.msra.mxu0 0.0
        %1342 = vmatprep.subr.mxu0 0.0
        %1343 = vmatpush2.msra.mxu0 0.0
        %1344 = vmatprep.subr.mxu0 0.0
        %1345 = vmatpush2.msra.mxu0 0.0
        %1346 = vmatprep.subr.mxu0 0.0
        %1347 = vmatpush2.msra.mxu0 0.0
        %1348 = vmatprep.subr.mxu0 0.0
        %1349 = vmatpush2.msra.mxu0 0.0
        %1350 = vmatprep.subr.mxu0 0.0
        %1351 = vmatpush2.msra.mxu0 0.0
        %1352 = vmatprep.subr.mxu0 0.0
        %1353 = vmatpush2.msra.mxu0 0.0
        %1354 = vmatprep.subr.mxu0 0.0
        %1355 = vmatpush2.msra.mxu0 0.0
        %1356 = vmatprep.subr.mxu0 0.0
        %1357 = vmatpush2.msra.mxu0 0.0
        %1358 = vmatprep.subr.mxu0 0.0
        %1359 = vmatpush2.msra.mxu0 0.0
        %1360 = vmatprep.subr.mxu0 0.0
        %1361 = vmatpush2.msra.mxu0 0.0
        %1362 = vmatprep.subr.mxu0 0.0
        %1363 = vmatpush2.msra.mxu0 0.0
        %1364 = vmatprep.subr.mxu0 0.0
        %1365 = vmatpush2.msra.mxu0 0.0
        %1366 = vmatprep.subr.mxu0 0.0
        %1367 = vmatpush2.msra.mxu0 0.0
        %1368 = vmatprep.subr.mxu0 0.0
        %1369 = vmatpush2.msra.mxu0 0.0
        %1370 = vmatprep.mubr.f32.mxu0 0.0
        %1371 = vmatmul.mubr.f32.gmra.mxu0 %v1301
        %v1372 = vpop.f32.mrf.mxu0
        %v1373 = vadd.f32 0.0, %v1372
        %v1374 = vpop.f32.mrf.mxu0
        %1375 = vmatprep.mubr.f32.mxu0 0.0
        %1376 = vmatmul.mubr.f32.gmra.mxu0 %v1304
        %v1377 = vpop.f32.mrf.mxu0
        %v1378 = vadd.f32 0.0, %v1377
        %v1379 = vpop.f32.mrf.mxu0
        %1380 = vdwg.mxu0
        %v1381 = vrcp.pop %v1373
        %v1382 = vmul.f32 %v1284, %v1381
        %v1383 = vrcp.pop %v1378
        %v1384 = vmul.f32 %v1299, %v1383
        %v1385 = vpack.c.bf16 %v1384, %v1382
        %v1386 = vld [vmem:[#allocation8] sm:$0xf]
        %v1387 = vld [vmem:[#allocation8 + $0x4] sm:$0xf]
        %v1388 = vld [vmem:[#allocation8 + $0x8] sm:$0xf]
        %v1389 = vld [vmem:[#allocation8 + $0xc] sm:$0xf]
        %v1390 = vld [vmem:[#allocation8 + $0x10] sm:$0xf]
        %v1391 = vld [vmem:[#allocation8 + $0x14] sm:$0xf]
        %v1392 = vld [vmem:[#allocation8 + $0x18] sm:$0xf]
        %v1393 = vld [vmem:[#allocation8 + $0x1c] sm:$0xf]
        %v1394 = vld [vmem:[#allocation8 + $0x20] sm:$0xf]
        %v1395 = vld [vmem:[#allocation8 + $0x24] sm:$0xf]
        %v1396 = vld [vmem:[#allocation8 + $0x28] sm:$0xf]
        %v1397 = vld [vmem:[#allocation8 + $0x2c] sm:$0xf]
        %v1398 = vld [vmem:[#allocation8 + $0x30] sm:$0xf]
        %v1399 = vld [vmem:[#allocation8 + $0x34] sm:$0xf]
        %v1400 = vld [vmem:[#allocation8 + $0x38] sm:$0xf]
        %v1401 = vld [vmem:[#allocation8 + $0x3c] sm:$0xf]
        %v1402 = vld [vmem:[%s4] sm:$0x1]
        %v1404 = vlaneseq
        %v1405 = vshrl.u32 %v1404, 7
        %v1406 = vsub.s32 0, %v1405
        %v1407 = vrot.slane %v1402, %v1406
        %v1425 = vunpack.c.l.b16 %v1386
        %v1426 = vunpack.c.l.b16 %v1387
        %v1427 = vunpack.c.l.b16 %v1388
        %v1428 = vunpack.c.l.b16 %v1389
        %v1429 = vunpack.c.l.b16 %v1390
        %v1430 = vunpack.c.l.b16 %v1391
        %v1431 = vunpack.c.l.b16 %v1392
        %v1432 = vunpack.c.l.b16 %v1393
        %v1433 = vunpack.c.l.b16 %v1394
        %v1434 = vunpack.c.l.b16 %v1395
        %v1435 = vunpack.c.l.b16 %v1396
        %v1436 = vunpack.c.l.b16 %v1397
        %v1437 = vunpack.c.l.b16 %v1398
        %v1438 = vunpack.c.l.b16 %v1399
        %v1439 = vunpack.c.l.b16 %v1400
        %v1440 = vunpack.c.l.b16 %v1401
        %v1441 = vpack.c.b16 %v1426, %v1425
        %v1442 = vpack.c.b16 %v1428, %v1427
        %v1443 = vpack.c.b16 %v1430, %v1429
        %v1444 = vpack.c.b16 %v1432, %v1431
        %v1445 = vpack.c.b16 %v1434, %v1433
        %v1446 = vpack.c.b16 %v1436, %v1435
        %v1447 = vpack.c.b16 %v1438, %v1437
        %v1448 = vpack.c.b16 %v1440, %v1439
        %1457 = vmatprep.subr.bf16.mxu0 0
        %1458 = vmatpush1.bf16.msra.mxu0 %v1448
        %1459 = vmatprep.subr.bf16.mxu0 0
        %1460 = vmatpush1.bf16.msra.mxu0 %v1447
        %1461 = vmatprep.subr.bf16.mxu0 0
        %1462 = vmatpush1.bf16.msra.mxu0 %v1446
        %1463 = vmatprep.subr.bf16.mxu0 0
        %1464 = vmatpush1.bf16.msra.mxu0 %v1445
        %1465 = vmatprep.subr.bf16.mxu0 0
        %1466 = vmatpush1.bf16.msra.mxu0 %v1444
        %1467 = vmatprep.subr.bf16.mxu0 0
        %1468 = vmatpush1.bf16.msra.mxu0 %v1443
        %1469 = vmatprep.subr.bf16.mxu0 0
        %1470 = vmatpush1.bf16.msra.mxu0 %v1442
        %1471 = vmatprep.subr.bf16.mxu0 0
        %1472 = vmatpush1.bf16.msra.mxu0 %v1441
        %1473 = vmatprep.subr.bf16.mxu0 0
        %1474 = vmatpush2.bf16.msra.mxu0 0
        %1475 = vmatprep.subr.bf16.mxu0 0
        %1476 = vmatpush2.bf16.msra.mxu0 0
        %1477 = vmatprep.subr.bf16.mxu0 0
        %1478 = vmatpush2.bf16.msra.mxu0 0
        %1479 = vmatprep.subr.bf16.mxu0 0
        %1480 = vmatpush2.bf16.msra.mxu0 0
        %1481 = vmatprep.subr.bf16.mxu0 0
        %1482 = vmatpush2.bf16.msra.mxu0 0
        %1483 = vmatprep.subr.bf16.mxu0 0
        %1484 = vmatpush2.bf16.msra.mxu0 0
        %1485 = vmatprep.subr.bf16.mxu0 0
        %1486 = vmatpush2.bf16.msra.mxu0 0
        %1487 = vmatprep.subr.bf16.mxu0 0
        %1488 = vmatpush2.bf16.msra.mxu0 0
        %1489 = vmatprep.mubr.bf16.mxu0 0
        %1490 = vmatmul.mubr.bf16.gmra.mxu0 %v1385
        %v1491 = vpop.f32.mrf.mxu0
        %v1492 = vadd.f32 %v1407, %v1491
        %v1493 = vpop.f32.mrf.mxu0
        %v1494 = vpop.f32.mrf.mxu0
        %v1495 = vadd.f32 %v1407, %v1494
        %v1496 = vpop.f32.mrf.mxu0
        %1497 = vdwg.mxu0
        %1498 = vst [vmem:[%s309] sm:$0xff] %v1492
        %1499 = vst [vmem:[%s309 + $0x8] sm:$0xff] %v1495
        %s1500 = sand.u32 %s142, 1
        %s1501 = scalar_lea.sflag [#allocation4], %s1500
        %s1502 = sand.u32 %s142, 1
        %s1503 = smul.addr %s1502, 16
        %s1504 = scalar_lea.vmem [#allocation10], %s1503
        // Predicated region
        $region57: #{tpu_custom_call.1} parent=39 // pred_check
          %p1505 = pneg %p152
        $region58: #{tpu_custom_call.1} parent=39 // pred_check_branch
          %1507 = sbr.rel (%p1505) target = $region60
        $region59: #{tpu_custom_call.1} parent=39 // pred_region
          %s1508 = smul.u32 2, %s24
          %s1510 = ssub.s32 256, 256
          %1511 = vsyncadd %s1501, %s1510
          %s1512 = smul.addr %s1508, 128
          %s1513 = scalar_lea.hbm %s5, %s1512
          %s1514 = sshll.u32 %s1504, 4
          %s1515 = int_to_ptr.vmem [resolvable:$true] %s1514
          %1520 = dma.vmem_to_hbm [thread:$0]  %s1515, 256, %s1513, %s1501, 128, 128, 8
        $region60: #{tpu_custom_call.1} parent=39 // pred_fallthru
          _
      $region40: #{tpu_custom_call.1} parent=5 // pred_fallthru
        _
      %p1521 = scmp.le.s32.totalorder 2, %s19
      // Predicated region
      $region61: #{tpu_custom_call.1} parent=5 // pred_check
        %p1522 = pneg %p1521
      $region62: #{tpu_custom_call.1} parent=5 // pred_check_branch
        %1524 = sbr.rel (%p1522) target = $region64
      $region63: #{tpu_custom_call.1} parent=5 // pred_region
        %s1525 = ssub.s32 %s19, 2
        // Predicated region
        $region65: #{tpu_custom_call.1} parent=63 // pred_check
          %p1526 = pneg %p158
        $region66: #{tpu_custom_call.1} parent=63 // pred_check_branch
          %1528 = sbr.rel (%p1526) target = $region68
        $region67: #{tpu_custom_call.1} parent=63 // pred_region
          %s1529 = sand.u32 %s143, 1
          %s1530 = scalar_lea.sflag [#allocation4], %s1529
          %s1531 = sand.u32 %s143, 1
          %s1532 = smul.addr %s1531, 16
          %s1533 = scalar_lea.vmem [#allocation10], %s1532
          %1534 = dma.done %s1530, 256
        $region68: #{tpu_custom_call.1} parent=63 // pred_fallthru
          _
      $region64: #{tpu_custom_call.1} parent=5 // pred_fallthru
        _
    $region6: #{tpu_custom_call.1} parent=1 // loop_footer
      %s23 = sadd.s32 1, %s19
    $region7: #{tpu_custom_call.1} parent=1 // loop_footer_branch
      %18 = sbr.rel target = $region3
    $region8: #{tpu_custom_call.1} parent=1 // loop_exit
      _
    %1535 = vsyncpa [#allocation3], 1
    %s1536 = scalar_lea.sflag [#allocation3], 1
    %1537 = vsyncpa %s1536, 1
    %1538 = vsyncpa [#allocation6], 1
    %1539 = vsyncpa [#allocation9], 1
    %1540 = vsyncpa [#allocation4], 1
    %s1541 = scalar_lea.sflag [#allocation4], 1
    %1542 = vsyncpa %s1541, 1

</llo_original>
